<compile_context>
chip_gen: v7x
topology: tpu7x:2x2x1
jax: 0.10.0
libtpu: 0.0.40
codegen_flags: <defaults>
</compile_context>

<pallas_src>
import math
import functools

import jax
import jax.numpy as jnp
from jax.experimental import pallas as pl
from jax.experimental.pallas import tpu as pltpu


def _round_up(x, m):
    return (x + m - 1) // m * m


# ------------------------------ Pallas kernel --------------------------------
def _conv_lstm_kernel(slab_ref, w_ref, bias_ref, c0_ref, h1_ref, c1_ref, *,
                      Cp, Lout, tap_offsets):
    """One batch element per grid step.

    slab_ref: (1, Ctot, Lin)       bf16  zero-padded [x | h_0 | c_0], CHW-flattened
    w_ref:    (K*K, 4*Cp, Ctot)    bf16  tap-major fused weight [W_ih|W_hh|W_ch(g=0)]
    bias_ref: (4*Cp, 1)            f32   combined bias (b_ih + b_hh + gate-placed b_ch)
    c0_ref:   (1, Cp, Lout)        f32   cell state, padded-width output layout
    h1_ref, c1_ref: (1, Cp, Lout)  f32   outputs (padded-width layout)
    """
    x = slab_ref[0]                                   # (Ctot, Lin) bf16, loaded once

    # K*K statically-unrolled shifted-window matmuls (no im2col buffer, no 9x HBM).
    acc = None
    for t, d in enumerate(tap_offsets):               # static taps -> static slices
        win = x[:, d:d + Lout]                        # (Ctot, Lout) bf16
        part = jnp.dot(w_ref[t], win, preferred_element_type=jnp.float32)
        acc = part if acc is None else acc + part
    acc = acc + bias_ref[...]                         # (4Cp, Lout) f32, lane broadcast

    # Gate order matches torch: [i | f | g | o]; peephole W_ch has zero rows for g.
    gi = jax.nn.sigmoid(acc[0 * Cp:1 * Cp, :])
    gf = jax.nn.sigmoid(acc[1 * Cp:2 * Cp, :])
    gg = jnp.tanh(acc[2 * Cp:3 * Cp, :])
    go = jax.nn.sigmoid(acc[3 * Cp:4 * Cp, :])

    c0 = c0_ref[0]                                    # (Cp, Lout) f32 full precision
    c1 = gf * c0 + gi * gg
    h1 = go * jnp.tanh(c1)

    h1_ref[0] = h1                                    # dense, 128-multiple lane stores
    c1_ref[0] = c1


# --------------------------- parameter preparation ---------------------------
def prepare_conv_lstm_params(params, in_channels, out_channels, kernel_size):
    """Hoisted, call-once parameter prep (do NOT redo this every forward call).

    Returns (w_taps, bias):
      w_taps: (K*K, 4*Cp, Ctot) bf16 -- tap-major fused weight; columns ordered
              [x-chan | h-chan | c-chan], zero rows for the g-gate peephole
              (wc_blank), gate rows padded C -> Cp, columns zero-padded to Ctot.
      bias:   (4*Cp, 1) f32 -- b_ih + b_hh + gate-placed b_ch (g slot zero).
    """
    w_ih, w_hh, w_ch, b_ih, b_hh, b_ch = params
    C, Cin, K = out_channels, in_channels, kernel_size
    Cp = _round_up(C, 8)                       # sublane-aligned gate slices
    Ctot_raw = Cin + 2 * C
    Ctot = _round_up(Ctot_raw, 16)             # bf16 sublane packing of contraction

    def pad_gate_rows(w, num_gates):
        if Cp == C:
            return w
        padw = [(0, Cp - C)] + [(0, 0)] * (w.ndim - 1)
        return jnp.concatenate(
            [jnp.pad(w[g * C:(g + 1) * C], padw) for g in range(num_gates)], axis=0)

    # Insert the zero g-gate block (wc_blank) into the peephole weight / bias.
    w_ch4 = jnp.concatenate(
        [w_ch[:2 * C], jnp.zeros((C,) + w_ch.shape[1:], w_ch.dtype), w_ch[2 * C:]],
        axis=0)
    b_ch4 = jnp.concatenate(
        [b_ch[:2 * C], jnp.zeros((C,), b_ch.dtype), b_ch[2 * C:]])

    w_cat = jnp.concatenate(
        [pad_gate_rows(w_ih, 4), pad_gate_rows(w_hh, 4), pad_gate_rows(w_ch4, 4)],
        axis=1)                                            # (4Cp, Ctot_raw, K, K)
    w_cat = jnp.pad(w_cat, ((0, 0), (0, Ctot - Ctot_raw), (0, 0), (0, 0)))
    w_taps = jnp.transpose(w_cat, (2, 3, 0, 1)).reshape(K * K, 4 * Cp, Ctot)
    w_taps = w_taps.astype(jnp.bfloat16)

    bias = pad_gate_rows(b_ih + b_hh + b_ch4, 4).reshape(4 * Cp, 1)
    return w_taps, bias.astype(jnp.float32)


# ---------------------------------- forward ----------------------------------
def conv2d_lstm_cell_pallas(x_nchw, h0_nchw, c0_nchw, params=None, *,
                            kernel_size=3, stride=1, padding=1, dilation=1,
                            groups=1, prepared=None):
    """Forward pass matching Conv2dLSTMCell.forward. NCHW in / NCHW out.

    Returns (h_1, (h_1, c_1)) like the PyTorch module.  Pass `prepared`
    (from prepare_conv_lstm_params) to skip per-call parameter prep.
    """
    if stride != 1 or dilation != 1 or groups != 1:
        raise NotImplementedError(
            "Pallas Conv2dLSTMCell supports stride=1, dilation=1, groups=1 only.")
    K = kernel_size
    if K % 2 != 1:
        raise NotImplementedError("odd kernel_size only (module needs wx/wh shapes to match)")
    pad = padding
    pad_h = K // 2

    N, Cin, H, W = x_nchw.shape
    C = h0_nchw.shape[1]
    Ho = H + 2 * pad - K + 1
    Wo = W + 2 * pad - K + 1
    if Ho <= 0 or Wo <= 0:
        raise ValueError("conv output spatial size is non-positive")
    if h0_nchw.shape != (N, C, Ho, Wo) or c0_nchw.shape != (N, C, Ho, Wo):
        raise ValueError(
            f"h_0 / c_0 must have the conv-output spatial size ({Ho}, {Wo}); "
            f"got {h0_nchw.shape} / {c0_nchw.shape}")

    # Shared zero-padded spatial size of all three convolutions (odd K).
    Hp, Wp = Ho + K - 1, Wo + K - 1

    Cp = _round_up(C, 8)
    Ctot_raw = Cin + 2 * C
    Ctot = _round_up(Ctot_raw, 16)

    # Padded-width output layout: flat p = ho*Wp + wo.  Columns wo >= Wo are wasted
    # lanes (K-1 per row) but make every tap window a contiguous static lane slice.
    Lout_raw = Ho * Wp
    Lout = _round_up(Lout_raw, 128)            # dense (unmasked) output stores
    delta_max = (K - 1) * Wp + (K - 1)
    Lin = _round_up(Lout + delta_max, 128)     # every window d + Lout stays in-bounds
    tap_offsets = tuple(kh * Wp + kw for kh in range(K) for kw in range(K))

    if prepared is None:
        if params is None:
            raise ValueError("need either params or prepared")
        prepared = prepare_conv_lstm_params(params, Cin, C, K)
    w_taps, bias = prepared
    assert w_taps.shape == (K * K, 4 * Cp, Ctot), w_taps.shape
    assert bias.shape == (4 * Cp, 1), bias.shape

    # --- activation prep: bf16 BEFORE padding; no im2col / 9x expansion anywhere ---
    bf = jnp.bfloat16
    x_p = jnp.pad(x_nchw.astype(bf), ((0, 0), (0, 0), (pad, pad), (pad, pad)))
    h0_p = jnp.pad(h0_nchw.astype(bf), ((0, 0), (0, 0), (pad_h, pad_h), (pad_h, pad_h)))
    c0_p = jnp.pad(c0_nchw.astype(bf), ((0, 0), (0, 0), (pad_h, pad_h), (pad_h, pad_h)))
    slab = jnp.concatenate([x_p, h0_p, c0_p], axis=1).reshape(N, Ctot_raw, Hp * Wp)
    slab = jnp.pad(slab, ((0, 0), (0, Ctot - Ctot_raw), (0, Lin - Hp * Wp)))

    # c_0 for the recurrence: f32, padded-width output layout, lane-dense.
    c0_pw = jnp.pad(c0_nchw.astype(jnp.float32),
                    ((0, 0), (0, Cp - C), (0, 0), (0, Wp - Wo)))
    c0_pw = c0_pw.reshape(N, Cp, Lout_raw)
    c0_pw = jnp.pad(c0_pw, ((0, 0), (0, 0), (0, Lout - Lout_raw)))

    kernel = functools.partial(_conv_lstm_kernel, Cp=Cp, Lout=Lout,
                               tap_offsets=tap_offsets)

    h1, c1 = pl.pallas_call(
        kernel,
        out_shape=(jax.ShapeDtypeStruct((N, Cp, Lout), jnp.float32),
                   jax.ShapeDtypeStruct((N, Cp, Lout), jnp.float32)),
        grid_spec=pltpu.PrefetchScalarGridSpec(
            num_scalar_prefetch=0,
            grid=(N,),
            in_specs=[
                pl.BlockSpec((1, Ctot, Lin), lambda n: (n, 0, 0)),          # padded slab
                pl.BlockSpec((K * K, 4 * Cp, Ctot), lambda n: (0, 0, 0)),   # tap weights (grid-invariant -> DMA'd once)
                pl.BlockSpec((4 * Cp, 1), lambda n: (0, 0)),                # combined bias
                pl.BlockSpec((1, Cp, Lout), lambda n: (n, 0, 0)),           # c_0 (f32)
            ],
            out_specs=[
                pl.BlockSpec((1, Cp, Lout), lambda n: (n, 0, 0)),
                pl.BlockSpec((1, Cp, Lout), lambda n: (n, 0, 0)),
            ],
        ),
        compiler_params=pltpu.CompilerParams(
            dimension_semantics=("parallel",),
            vmem_limit_bytes=32 * 1024 * 1024),
    )(slab, w_taps, bias, c0_pw)

    # Un-pad: (N, Cp, Lout) -> NCHW.  Cheap, output-sized slices/reshapes only.
    def unpad(y):
        return y[:, :, :Lout_raw].reshape(N, Cp, Ho, Wp)[:, :C, :, :Wo]

    h1_nchw = unpad(h1)
    c1_nchw = unpad(c1)
    return h1_nchw, (h1_nchw, c1_nchw)


# ----------------- pure-JAX reference (for correctness check) -----------------
def conv2d_lstm_cell_ref(x, h0, c0, params, kernel_size=3, padding=1):
    w_ih, w_hh, w_ch, b_ih, b_hh, b_ch = params
    C = h0.shape[1]
    pad_h = kernel_size // 2

    def conv(inp, w, b, p):
        y = jax.lax.conv_general_dilated(
            inp, w, window_strides=(1, 1), padding=((p, p), (p, p)),
            dimension_numbers=('NCHW', 'OIHW', 'NCHW'))
        return y + b[None, :, None, None]

    wx = conv(x, w_ih, b_ih, padding)
    wh = conv(h0, w_hh, b_hh, pad_h)
    wc = conv(c0, w_ch, b_ch, pad_h)
    blank = jnp.zeros((wc.shape[0], C, wc.shape[2], wc.shape[3]), wc.dtype)
    wxhc = wx + wh + jnp.concatenate([wc[:, :2 * C], blank, wc[:, 2 * C:]], axis=1)
    i = jax.nn.sigmoid(wxhc[:, :C])
    f = jax.nn.sigmoid(wxhc[:, C:2 * C])
    g = jnp.tanh(wxhc[:, 2 * C:3 * C])
    o = jax.nn.sigmoid(wxhc[:, 3 * C:])
    c1 = f * c0 + i * g
    h1 = o * jnp.tanh(c1)
    return h1, c1


if __name__ == "__main__":
    # Small, deterministic problem: batch=2, in_channels=4, out_channels=8,
    # spatial 16x16, kernel 3x3, stride=1, padding=1, groups=1.
    N, Cin, Cout, H, W, K = 2, 4, 8, 16, 16, 3

    key = jax.random.PRNGKey(0)
    ks = jax.random.split(key, 9)

    # reset_parameters(): stdv = 1 / sqrt(4 * in_channels * kh * kw)
    stdv = 1.0 / math.sqrt(4 * Cin * K * K)
    u = lambda k, shape: jax.random.uniform(k, shape, jnp.float32, -stdv, stdv)

    w_ih = u(ks[0], (4 * Cout, Cin, K, K))
    w_hh = u(ks[1], (4 * Cout, Cout, K, K))
    w_ch = u(ks[2], (3 * Cout, Cout, K, K))
    b_ih = u(ks[3], (4 * Cout,))
    b_hh = u(ks[4], (4 * Cout,))
    b_ch = u(ks[5], (3 * Cout,))
    params = (w_ih, w_hh, w_ch, b_ih, b_hh, b_ch)

    x = jax.random.normal(ks[6], (N, Cin, H, W), jnp.float32)
    h0 = jax.random.normal(ks[7], (N, Cout, H, W), jnp.float32)
    c0 = jax.random.normal(ks[8], (N, Cout, H, W), jnp.float32)

    # Parameter prep is hoisted: run it once, reuse across forward calls.
    prepared = prepare_conv_lstm_params(params, Cin, Cout, K)

    h1, (h1_again, c1) = conv2d_lstm_cell_pallas(
        x, h0, c0, kernel_size=K, padding=1, prepared=prepared)
    jax.block_until_ready((h1, c1))

    h1_ref, c1_ref = conv2d_lstm_cell_ref(x, h0, c0, params, kernel_size=K, padding=1)
    assert h1.shape == (N, Cout, H, W) and c1.shape == (N, Cout, H, W)
    # bf16 matmul operands / f32 accumulation: tolerances relaxed vs pure f32.
    err_h = float(jnp.max(jnp.abs(h1 - h1_ref)))
    err_c = float(jnp.max(jnp.abs(c1 - c1_ref)))
    assert err_h < 2e-2 and err_c < 2e-2, (err_h, err_c)

    print("KERNEL_OK")
</pallas_src>

<mosaic_0001>
module attributes {stable_mosaic.version = 11 : i64} {
  func.func @_conv_lstm_kernel(%arg0: i32, %arg1: memref<1x32x512xbf16, #tpu.memory_space<vmem>>, %arg2: memref<9x32x32xbf16, #tpu.memory_space<vmem>>, %arg3: memref<32x1xf32, #tpu.memory_space<vmem>>, %arg4: memref<1x8x384xf32, #tpu.memory_space<vmem>>, %arg5: memref<1x8x384xf32, #tpu.memory_space<vmem>>, %arg6: memref<1x8x384xf32, #tpu.memory_space<vmem>>) attributes {dimension_semantics = [#tpu.dimension_semantics<parallel>], iteration_bounds = array<i64: 2>, scalar_prefetch = 0 : i64, scratch_operands = 0 : i64, tpu.core_type = #tpu.core_type<tc>, window_params = [{transform_indices = @transform_0, window_bounds = array<i64: 1, 32, 512>}, {pipeline_mode = #tpu.pipeline_mode<synchronous>, transform_indices = @transform_1, window_bounds = array<i64: 9, 32, 32>}, {pipeline_mode = #tpu.pipeline_mode<synchronous>, transform_indices = @transform_2, window_bounds = array<i64: 32, 1>}, {transform_indices = @transform_3, window_bounds = array<i64: 1, 8, 384>}, {transform_indices = @transform_4, window_bounds = array<i64: 1, 8, 384>}, {transform_indices = @transform_5, window_bounds = array<i64: 1, 8, 384>}]} {
    %c0 = arith.constant 0 : index
    %c0_0 = arith.constant 0 : index
    %c0_1 = arith.constant 0 : index
    %0 = vector.load %arg1[%c0, %c0_0, %c0_1] : memref<1x32x512xbf16, #tpu.memory_space<vmem>>, vector<1x32x512xbf16>
    %1 = vector.shape_cast %0 : vector<1x32x512xbf16> to vector<32x512xbf16>
    %2 = vector.extract_strided_slice %1 {offsets = [0, 0], sizes = [32, 384], strides = [1, 1]} : vector<32x512xbf16> to vector<32x384xbf16>
    %c0_2 = arith.constant 0 : index
    %c0_3 = arith.constant 0 : index
    %c0_4 = arith.constant 0 : index
    %3 = vector.load %arg2[%c0_2, %c0_3, %c0_4] : memref<9x32x32xbf16, #tpu.memory_space<vmem>>, vector<1x32x32xbf16>
    %4 = vector.shape_cast %3 : vector<1x32x32xbf16> to vector<32x32xbf16>
    %cst = arith.constant dense<0.000000e+00> : vector<32x384xf32>
    %5 = tpu.matmul %4, %2, %cst {dimension_numbers = #tpu.dot_dimension_numbers<[1], [0], [0], [1], [0, 0, 1, 1], [], []>} : vector<32x32xbf16>, vector<32x384xbf16>, vector<32x384xf32> -> vector<32x384xf32>
    %6 = vector.extract_strided_slice %1 {offsets = [0, 1], sizes = [32, 384], strides = [1, 1]} : vector<32x512xbf16> to vector<32x384xbf16>
    %c1 = arith.constant 1 : index
    %c0_5 = arith.constant 0 : index
    %c0_6 = arith.constant 0 : index
    %7 = vector.load %arg2[%c1, %c0_5, %c0_6] : memref<9x32x32xbf16, #tpu.memory_space<vmem>>, vector<1x32x32xbf16>
    %8 = vector.shape_cast %7 : vector<1x32x32xbf16> to vector<32x32xbf16>
    %cst_7 = arith.constant dense<0.000000e+00> : vector<32x384xf32>
    %9 = tpu.matmul %8, %6, %cst_7 {dimension_numbers = #tpu.dot_dimension_numbers<[1], [0], [0], [1], [0, 0, 1, 1], [], []>} : vector<32x32xbf16>, vector<32x384xbf16>, vector<32x384xf32> -> vector<32x384xf32>
    %10 = arith.addf %5, %9 : vector<32x384xf32>
    %11 = vector.extract_strided_slice %1 {offsets = [0, 2], sizes = [32, 384], strides = [1, 1]} : vector<32x512xbf16> to vector<32x384xbf16>
    %c2 = arith.constant 2 : index
    %c0_8 = arith.constant 0 : index
    %c0_9 = arith.constant 0 : index
    %12 = vector.load %arg2[%c2, %c0_8, %c0_9] : memref<9x32x32xbf16, #tpu.memory_space<vmem>>, vector<1x32x32xbf16>
    %13 = vector.shape_cast %12 : vector<1x32x32xbf16> to vector<32x32xbf16>
    %cst_10 = arith.constant dense<0.000000e+00> : vector<32x384xf32>
    %14 = tpu.matmul %13, %11, %cst_10 {dimension_numbers = #tpu.dot_dimension_numbers<[1], [0], [0], [1], [0, 0, 1, 1], [], []>} : vector<32x32xbf16>, vector<32x384xbf16>, vector<32x384xf32> -> vector<32x384xf32>
    %15 = arith.addf %10, %14 : vector<32x384xf32>
    %16 = vector.extract_strided_slice %1 {offsets = [0, 18], sizes = [32, 384], strides = [1, 1]} : vector<32x512xbf16> to vector<32x384xbf16>
    %c3 = arith.constant 3 : index
    %c0_11 = arith.constant 0 : index
    %c0_12 = arith.constant 0 : index
    %17 = vector.load %arg2[%c3, %c0_11, %c0_12] : memref<9x32x32xbf16, #tpu.memory_space<vmem>>, vector<1x32x32xbf16>
    %18 = vector.shape_cast %17 : vector<1x32x32xbf16> to vector<32x32xbf16>
    %cst_13 = arith.constant dense<0.000000e+00> : vector<32x384xf32>
    %19 = tpu.matmul %18, %16, %cst_13 {dimension_numbers = #tpu.dot_dimension_numbers<[1], [0], [0], [1], [0, 0, 1, 1], [], []>} : vector<32x32xbf16>, vector<32x384xbf16>, vector<32x384xf32> -> vector<32x384xf32>
    %20 = arith.addf %15, %19 : vector<32x384xf32>
    %21 = vector.extract_strided_slice %1 {offsets = [0, 19], sizes = [32, 384], strides = [1, 1]} : vector<32x512xbf16> to vector<32x384xbf16>
    %c4 = arith.constant 4 : index
    %c0_14 = arith.constant 0 : index
    %c0_15 = arith.constant 0 : index
    %22 = vector.load %arg2[%c4, %c0_14, %c0_15] : memref<9x32x32xbf16, #tpu.memory_space<vmem>>, vector<1x32x32xbf16>
    %23 = vector.shape_cast %22 : vector<1x32x32xbf16> to vector<32x32xbf16>
    %cst_16 = arith.constant dense<0.000000e+00> : vector<32x384xf32>
    %24 = tpu.matmul %23, %21, %cst_16 {dimension_numbers = #tpu.dot_dimension_numbers<[1], [0], [0], [1], [0, 0, 1, 1], [], []>} : vector<32x32xbf16>, vector<32x384xbf16>, vector<32x384xf32> -> vector<32x384xf32>
    %25 = arith.addf %20, %24 : vector<32x384xf32>
    %26 = vector.extract_strided_slice %1 {offsets = [0, 20], sizes = [32, 384], strides = [1, 1]} : vector<32x512xbf16> to vector<32x384xbf16>
    %c5 = arith.constant 5 : index
    %c0_17 = arith.constant 0 : index
    %c0_18 = arith.constant 0 : index
    %27 = vector.load %arg2[%c5, %c0_17, %c0_18] : memref<9x32x32xbf16, #tpu.memory_space<vmem>>, vector<1x32x32xbf16>
    %28 = vector.shape_cast %27 : vector<1x32x32xbf16> to vector<32x32xbf16>
    %cst_19 = arith.constant dense<0.000000e+00> : vector<32x384xf32>
    %29 = tpu.matmul %28, %26, %cst_19 {dimension_numbers = #tpu.dot_dimension_numbers<[1], [0], [0], [1], [0, 0, 1, 1], [], []>} : vector<32x32xbf16>, vector<32x384xbf16>, vector<32x384xf32> -> vector<32x384xf32>
    %30 = arith.addf %25, %29 : vector<32x384xf32>
    %31 = vector.extract_strided_slice %1 {offsets = [0, 36], sizes = [32, 384], strides = [1, 1]} : vector<32x512xbf16> to vector<32x384xbf16>
    %c6 = arith.constant 6 : index
    %c0_20 = arith.constant 0 : index
    %c0_21 = arith.constant 0 : index
    %32 = vector.load %arg2[%c6, %c0_20, %c0_21] : memref<9x32x32xbf16, #tpu.memory_space<vmem>>, vector<1x32x32xbf16>
    %33 = vector.shape_cast %32 : vector<1x32x32xbf16> to vector<32x32xbf16>
    %cst_22 = arith.constant dense<0.000000e+00> : vector<32x384xf32>
    %34 = tpu.matmul %33, %31, %cst_22 {dimension_numbers = #tpu.dot_dimension_numbers<[1], [0], [0], [1], [0, 0, 1, 1], [], []>} : vector<32x32xbf16>, vector<32x384xbf16>, vector<32x384xf32> -> vector<32x384xf32>
    %35 = arith.addf %30, %34 : vector<32x384xf32>
    %36 = vector.extract_strided_slice %1 {offsets = [0, 37], sizes = [32, 384], strides = [1, 1]} : vector<32x512xbf16> to vector<32x384xbf16>
    %c7 = arith.constant 7 : index
    %c0_23 = arith.constant 0 : index
    %c0_24 = arith.constant 0 : index
    %37 = vector.load %arg2[%c7, %c0_23, %c0_24] : memref<9x32x32xbf16, #tpu.memory_space<vmem>>, vector<1x32x32xbf16>
    %38 = vector.shape_cast %37 : vector<1x32x32xbf16> to vector<32x32xbf16>
    %cst_25 = arith.constant dense<0.000000e+00> : vector<32x384xf32>
    %39 = tpu.matmul %38, %36, %cst_25 {dimension_numbers = #tpu.dot_dimension_numbers<[1], [0], [0], [1], [0, 0, 1, 1], [], []>} : vector<32x32xbf16>, vector<32x384xbf16>, vector<32x384xf32> -> vector<32x384xf32>
    %40 = arith.addf %35, %39 : vector<32x384xf32>
    %41 = vector.extract_strided_slice %1 {offsets = [0, 38], sizes = [32, 384], strides = [1, 1]} : vector<32x512xbf16> to vector<32x384xbf16>
    %c8 = arith.constant 8 : index
    %c0_26 = arith.constant 0 : index
    %c0_27 = arith.constant 0 : index
    %42 = vector.load %arg2[%c8, %c0_26, %c0_27] : memref<9x32x32xbf16, #tpu.memory_space<vmem>>, vector<1x32x32xbf16>
    %43 = vector.shape_cast %42 : vector<1x32x32xbf16> to vector<32x32xbf16>
    %cst_28 = arith.constant dense<0.000000e+00> : vector<32x384xf32>
    %44 = tpu.matmul %43, %41, %cst_28 {dimension_numbers = #tpu.dot_dimension_numbers<[1], [0], [0], [1], [0, 0, 1, 1], [], []>} : vector<32x32xbf16>, vector<32x384xbf16>, vector<32x384xf32> -> vector<32x384xf32>
    %45 = arith.addf %40, %44 : vector<32x384xf32>
    %c0_29 = arith.constant 0 : index
    %c0_30 = arith.constant 0 : index
    %46 = vector.load %arg3[%c0_29, %c0_30] : memref<32x1xf32, #tpu.memory_space<vmem>>, vector<32x1xf32>
    %47 = vector.broadcast %46 : vector<32x1xf32> to vector<32x384xf32>
    %48 = arith.addf %45, %47 : vector<32x384xf32>
    %49 = vector.extract_strided_slice %48 {offsets = [0, 0], sizes = [8, 384], strides = [1, 1]} : vector<32x384xf32> to vector<8x384xf32>
    %50 = arith.negf %49 : vector<8x384xf32>
    %51 = math.exp %50 : vector<8x384xf32>
    %cst_31 = arith.constant 1.000000e+00 : f32
    %52 = vector.broadcast %cst_31 : f32 to vector<8x384xf32>
    %53 = arith.addf %52, %51 : vector<8x384xf32>
    %54 = arith.divf %52, %53 : vector<8x384xf32>
    %55 = vector.extract_strided_slice %48 {offsets = [8, 0], sizes = [8, 384], strides = [1, 1]} : vector<32x384xf32> to vector<8x384xf32>
    %56 = arith.negf %55 : vector<8x384xf32>
    %57 = math.exp %56 : vector<8x384xf32>
    %cst_32 = arith.constant 1.000000e+00 : f32
    %58 = vector.broadcast %cst_32 : f32 to vector<8x384xf32>
    %59 = arith.addf %58, %57 : vector<8x384xf32>
    %60 = arith.divf %58, %59 : vector<8x384xf32>
    %61 = vector.extract_strided_slice %48 {offsets = [16, 0], sizes = [8, 384], strides = [1, 1]} : vector<32x384xf32> to vector<8x384xf32>
    %62 = math.tanh %61 : vector<8x384xf32>
    %63 = vector.extract_strided_slice %48 {offsets = [24, 0], sizes = [8, 384], strides = [1, 1]} : vector<32x384xf32> to vector<8x384xf32>
    %64 = arith.negf %63 : vector<8x384xf32>
    %65 = math.exp %64 : vector<8x384xf32>
    %cst_33 = arith.constant 1.000000e+00 : f32
    %66 = vector.broadcast %cst_33 : f32 to vector<8x384xf32>
    %67 = arith.addf %66, %65 : vector<8x384xf32>
    %68 = arith.divf %66, %67 : vector<8x384xf32>
    %c0_34 = arith.constant 0 : index
    %c0_35 = arith.constant 0 : index
    %c0_36 = arith.constant 0 : index
    %69 = vector.load %arg4[%c0_34, %c0_35, %c0_36] : memref<1x8x384xf32, #tpu.memory_space<vmem>>, vector<1x8x384xf32>
    %70 = vector.shape_cast %69 : vector<1x8x384xf32> to vector<8x384xf32>
    %71 = arith.mulf %60, %70 : vector<8x384xf32>
    %72 = arith.mulf %54, %62 : vector<8x384xf32>
    %73 = arith.addf %71, %72 : vector<8x384xf32>
    %74 = math.tanh %73 : vector<8x384xf32>
    %75 = arith.mulf %68, %74 : vector<8x384xf32>
    %c0_37 = arith.constant 0 : index
    %c0_38 = arith.constant 0 : index
    %c0_39 = arith.constant 0 : index
    %76 = vector.load %arg5[%c0_37, %c0_38, %c0_39] : memref<1x8x384xf32, #tpu.memory_space<vmem>>, vector<1x8x384xf32>
    %77 = vector.shape_cast %76 : vector<1x8x384xf32> to vector<8x384xf32>
    %78 = vector.shape_cast %75 : vector<8x384xf32> to vector<1x8x384xf32>
    tpu.vector_store %arg5[%c0_37, %c0_38, %c0_39], %78 {strides = array<i32>} : memref<1x8x384xf32, #tpu.memory_space<vmem>>, vector<1x8x384xf32>,
    %c0_40 = arith.constant 0 : index
    %c0_41 = arith.constant 0 : index
    %c0_42 = arith.constant 0 : index
    %79 = vector.load %arg6[%c0_40, %c0_41, %c0_42] : memref<1x8x384xf32, #tpu.memory_space<vmem>>, vector<1x8x384xf32>
    %80 = vector.shape_cast %79 : vector<1x8x384xf32> to vector<8x384xf32>
    %81 = vector.shape_cast %73 : vector<8x384xf32> to vector<1x8x384xf32>
    tpu.vector_store %arg6[%c0_40, %c0_41, %c0_42], %81 {strides = array<i32>} : memref<1x8x384xf32, #tpu.memory_space<vmem>>, vector<1x8x384xf32>,
    return
  }
  func.func @transform_0(%arg0: i32) -> (i32, i32, i32) {
    %c0_i32 = arith.constant 0 : i32
    %c0_i32_0 = arith.constant 0 : i32
    %c0_i32_1 = arith.constant 0 : i32
    return %arg0, %c0_i32, %c0_i32_0 : i32, i32, i32
  }
  func.func @transform_1(%arg0: i32) -> (i32, i32, i32) {
    %c0_i32 = arith.constant 0 : i32
    %c0_i32_0 = arith.constant 0 : i32
    %c0_i32_1 = arith.constant 0 : i32
    %c0_i32_2 = arith.constant 0 : i32
    return %c0_i32, %c0_i32_0, %c0_i32_1 : i32, i32, i32
  }
  func.func @transform_2(%arg0: i32) -> (i32, i32) {
    %c0_i32 = arith.constant 0 : i32
    %c0_i32_0 = arith.constant 0 : i32
    %c0_i32_1 = arith.constant 0 : i32
    return %c0_i32, %c0_i32_0 : i32, i32
  }
  func.func @transform_3(%arg0: i32) -> (i32, i32, i32) {
    %c0_i32 = arith.constant 0 : i32
    %c0_i32_0 = arith.constant 0 : i32
    %c0_i32_1 = arith.constant 0 : i32
    return %arg0, %c0_i32, %c0_i32_0 : i32, i32, i32
  }
  func.func @transform_4(%arg0: i32) -> (i32, i32, i32) {
    %c0_i32 = arith.constant 0 : i32
    %c0_i32_0 = arith.constant 0 : i32
    %c0_i32_1 = arith.constant 0 : i32
    return %arg0, %c0_i32, %c0_i32_0 : i32, i32, i32
  }
  func.func @transform_5(%arg0: i32) -> (i32, i32, i32) {
    %c0_i32 = arith.constant 0 : i32
    %c0_i32_0 = arith.constant 0 : i32
    %c0_i32_1 = arith.constant 0 : i32
    return %arg0, %c0_i32, %c0_i32_0 : i32, i32, i32
  }
}

</mosaic_0001>

<llo_original>
// kernel: tpu_custom_call.1
$region0: #{tpu_custom_call.1}
  #allocation0 [shape = 'u32[]', space=smem, size = 0x4, offset = 0x4, fixed_abs, tag = 'smem constant byte address 0x4 - core index']
  #allocation1 [shape = 'u32[144,128]{1,0:T(1,128)}', space=vmem, size = 0x12000, scoped, tag = 'internal scratch']
  %s0 = inlined_call_operand.hbm [shape: bf16[2,32,512], index: 0, kind: input, shape index: {}]
  %s1 = inlined_call_operand.hbm [shape: bf16[9,32,32], index: 1, kind: input, shape index: {}]
  %s2 = inlined_call_operand.vmem [shape: f32[32,1], index: 2, kind: input, shape index: {}]
  %s3 = inlined_call_operand.hbm [shape: f32[2,8,384], index: 3, kind: input, shape index: {}]
  %s4 = inlined_call_operand.hbm [shape: f32[2,8,384], index: 4, kind: output, shape index: {0}]
  %s5 = inlined_call_operand.hbm [shape: f32[2,8,384], index: 5, kind: output, shape index: {1}]
  %6 = xla_tuple %s4, %s5
  %s7 = sld [smem:[#allocation0]]
  $region69: #{tpu_custom_call.1} parent=0
    _
  %s9 = ssub.s32 1, %s7
  %s10 = scalar_select 0, %s9, %s7
  $region1: #{tpu_custom_call.1} parent=0
    #allocation2 [shape = 'u8[65536]{0}', space=vmem, size = 0x10000, scoped, tag = 'input window, operand 0']
    #allocation3 [shape = 's32[2]{0}', space=sflag, size = 0x8, scoped, tag = 'scoped memory for tpu_custom_call.1']
    #allocation4 [shape = 's32[2]{0}', space=sflag, size = 0x8, scoped, tag = 'scoped memory for tpu_custom_call.1']
    #allocation5 [shape = 'u8[73728]{0}', space=vmem, size = 0x12000, scoped, tag = 'input window, operand 1, single buffered']
    #allocation6 [shape = 's32[1]{0}', space=sflag, size = 0x4, scoped, tag = 'scoped memory for tpu_custom_call.1']
    #allocation7 [shape = 'u8[24576]{0}', space=vmem, size = 0x6000, scoped, tag = 'input window, operand 3']
    #allocation8 [shape = 'u8[24576]{0}', space=vmem, size = 0x6000, scoped, tag = 'output window, operand 0']
    #allocation9 [shape = 'u8[24576]{0}', space=vmem, size = 0x6000, scoped, tag = 'output window, operand 1']
    #allocation10 [shape = 's32[2]{0}', space=sflag, size = 0x8, scoped, tag = 'scoped memory for tpu_custom_call.1']
    %11 = vsyncpa [#allocation3], 0
    %s12 = scalar_lea.sflag [#allocation3], 1
    %13 = vsyncpa %s12, 0
    %14 = vsyncpa [#allocation6], 0
    %15 = vsyncpa [#allocation4], 0
    %s16 = scalar_lea.sflag [#allocation4], 1
    %17 = vsyncpa %s16, 0
    %18 = vsyncpa [#allocation10], 0
    %s19 = scalar_lea.sflag [#allocation10], 1
    %20 = vsyncpa %s19, 0
    loop: start=0, step=1, limit=4
    $region2: #{tpu_custom_call.1} parent=1 // loop_pre_header
      _
    $region3: #{tpu_custom_call.1} parent=1 // loop_header
      %s22 = sphi 0, %s26
      %p23 = scmp.ge.s32.totalorder %s22, 4
      %s32 = sphi 0, %s34
      %s35 = sphi 0, %s32
      %s36 = sphi 0, %s35
      %s52 = sphi 0, %s36
      %s56 = sphi 0, %s56
      %s58 = sphi 0, %s56
      %s59 = sphi 0, %s58
      %s73 = sphi 0, %s59
      %s77 = sphi 0, %s77
      %s79 = sphi 0, %s77
      %s80 = sphi 0, %s79
      %s94 = sphi 0, %s80
      %s100 = sphi 0, %s102
      %s103 = sphi 0, %s100
      %s104 = sphi 0, %s103
      %s120 = sphi 0, %s104
      %s126 = sphi 0, %s128
      %s129 = sphi 0, %s126
      %s130 = sphi 0, %s129
      %s146 = sphi 0, %s130
      %s152 = sphi 0, %s154
      %s155 = sphi 0, %s152
      %s156 = sphi 0, %s155
      %s172 = sphi 0, %s156
    $region4: #{tpu_custom_call.1} parent=1 // loop_header_branch
      %25 = sbr.rel (%p23) target = $region8
    $region5: #{tpu_custom_call.1} parent=1 // loop_body
      %s27 = ssub.s32 %s22, 1
      %s28 = ssub.s32 %s22, 2
      %s29 = sadd.s32 %s22, 1
      %s30 = ssub.s32 %s22, %s29
      %p31 = scmp.eq.s32.totalorder %s30, 0
      %s33 = sadd.s32 %s32, 1
      %s34 = scalar_select %p31, %s32, %s33
      %p37 = pneg %p31
      %p38 = scmp.eq.s32.totalorder %s22, 1
      %p39 = por %p37, %p38
      %p40 = scmp.ne.s32.totalorder %s32, %s35
      %p41 = scmp.eq.s32.totalorder %s22, 0
      %p42 = por %p40, %p41
      %p43 = scmp.ne.s32.totalorder %s32, %s35
      %p44 = scmp.eq.s32.totalorder %s27, 1
      %p45 = por %p43, %p44
      %p46 = scmp.ne.s32.totalorder %s35, %s36
      %p47 = scmp.eq.s32.totalorder %s27, 0
      %p48 = por %p46, %p47
      %p49 = scmp.ne.s32.totalorder %s35, %s36
      %p50 = scmp.eq.s32.totalorder %s28, 1
      %p51 = por %p49, %p50
      %p53 = scmp.ne.s32.totalorder %s36, %s52
      %p54 = scmp.eq.s32.totalorder %s28, 0
      %p55 = por %p53, %p54
      %s57 = sadd.s32 %s56, 1
      %p60 = scmp.eq.s32.totalorder %s22, 1
      %p61 = scmp.ne.s32.totalorder %s56, %s58
      %p62 = scmp.eq.s32.totalorder %s22, 0
      %p63 = por %p61, %p62
      %p64 = scmp.ne.s32.totalorder %s56, %s58
      %p65 = scmp.eq.s32.totalorder %s27, 1
      %p66 = por %p64, %p65
      %p67 = scmp.ne.s32.totalorder %s58, %s59
      %p68 = scmp.eq.s32.totalorder %s27, 0
      %p69 = por %p67, %p68
      %p70 = scmp.ne.s32.totalorder %s58, %s59
      %p71 = scmp.eq.s32.totalorder %s28, 1
      %p72 = por %p70, %p71
      %p74 = scmp.ne.s32.totalorder %s59, %s73
      %p75 = scmp.eq.s32.totalorder %s28, 0
      %p76 = por %p74, %p75
      %s78 = sadd.s32 %s77, 1
      %p81 = scmp.eq.s32.totalorder %s22, 1
      %p82 = scmp.ne.s32.totalorder %s77, %s79
      %p83 = scmp.eq.s32.totalorder %s22, 0
      %p84 = por %p82, %p83
      %p85 = scmp.ne.s32.totalorder %s77, %s79
      %p86 = scmp.eq.s32.totalorder %s27, 1
      %p87 = por %p85, %p86
      %p88 = scmp.ne.s32.totalorder %s79, %s80
      %p89 = scmp.eq.s32.totalorder %s27, 0
      %p90 = por %p88, %p89
      %p91 = scmp.ne.s32.totalorder %s79, %s80
      %p92 = scmp.eq.s32.totalorder %s28, 1
      %p93 = por %p91, %p92
      %p95 = scmp.ne.s32.totalorder %s80, %s94
      %p96 = scmp.eq.s32.totalorder %s28, 0
      %p97 = por %p95, %p96
      %s98 = ssub.s32 %s22, %s29
      %p99 = scmp.eq.s32.totalorder %s98, 0
      %s101 = sadd.s32 %s100, 1
      %s102 = scalar_select %p99, %s100, %s101
      %p105 = pneg %p99
      %p106 = scmp.eq.s32.totalorder %s22, 1
      %p107 = por %p105, %p106
      %p108 = scmp.ne.s32.totalorder %s100, %s103
      %p109 = scmp.eq.s32.totalorder %s22, 0
      %p110 = por %p108, %p109
      %p111 = scmp.ne.s32.totalorder %s100, %s103
      %p112 = scmp.eq.s32.totalorder %s27, 1
      %p113 = por %p111, %p112
      %p114 = scmp.ne.s32.totalorder %s103, %s104
      %p115 = scmp.eq.s32.totalorder %s27, 0
      %p116 = por %p114, %p115
      %p117 = scmp.ne.s32.totalorder %s103, %s104
      %p118 = scmp.eq.s32.totalorder %s28, 1
      %p119 = por %p117, %p118
      %p121 = scmp.ne.s32.totalorder %s104, %s120
      %p122 = scmp.eq.s32.totalorder %s28, 0
      %p123 = por %p121, %p122
      %s124 = ssub.s32 %s22, %s29
      %p125 = scmp.eq.s32.totalorder %s124, 0
      %s127 = sadd.s32 %s126, 1
      %s128 = scalar_select %p125, %s126, %s127
      %p131 = pneg %p125
      %p132 = scmp.eq.s32.totalorder %s22, 1
      %p133 = por %p131, %p132
      %p134 = scmp.ne.s32.totalorder %s126, %s129
      %p135 = scmp.eq.s32.totalorder %s22, 0
      %p136 = por %p134, %p135
      %p137 = scmp.ne.s32.totalorder %s126, %s129
      %p138 = scmp.eq.s32.totalorder %s27, 1
      %p139 = por %p137, %p138
      %p140 = scmp.ne.s32.totalorder %s129, %s130
      %p141 = scmp.eq.s32.totalorder %s27, 0
      %p142 = por %p140, %p141
      %p143 = scmp.ne.s32.totalorder %s129, %s130
      %p144 = scmp.eq.s32.totalorder %s28, 1
      %p145 = por %p143, %p144
      %p147 = scmp.ne.s32.totalorder %s130, %s146
      %p148 = scmp.eq.s32.totalorder %s28, 0
      %p149 = por %p147, %p148
      %s150 = ssub.s32 %s22, %s29
      %p151 = scmp.eq.s32.totalorder %s150, 0
      %s153 = sadd.s32 %s152, 1
      %s154 = scalar_select %p151, %s152, %s153
      %p157 = pneg %p151
      %p158 = scmp.eq.s32.totalorder %s22, 1
      %p159 = por %p157, %p158
      %p160 = scmp.ne.s32.totalorder %s152, %s155
      %p161 = scmp.eq.s32.totalorder %s22, 0
      %p162 = por %p160, %p161
      %p163 = scmp.ne.s32.totalorder %s152, %s155
      %p164 = scmp.eq.s32.totalorder %s27, 1
      %p165 = por %p163, %p164
      %p166 = scmp.ne.s32.totalorder %s155, %s156
      %p167 = scmp.eq.s32.totalorder %s27, 0
      %p168 = por %p166, %p167
      %p169 = scmp.ne.s32.totalorder %s155, %s156
      %p170 = scmp.eq.s32.totalorder %s28, 1
      %p171 = por %p169, %p170
      %p173 = scmp.ne.s32.totalorder %s156, %s172
      %p174 = scmp.eq.s32.totalorder %s28, 0
      %p175 = por %p173, %p174
      %p176 = scmp.le.s32.totalorder 1, %s22
      %p177 = scmp.lt.s32.totalorder %s22, 3
      %p178 = pnand %p176, %p177
      %p179 = pneg %p178
      // Predicated region
      $region9: #{tpu_custom_call.1} parent=5 // pred_check
        _
      $region10: #{tpu_custom_call.1} parent=5 // pred_check_branch
        %181 = sbr.rel (%p178) target = $region12
      $region11: #{tpu_custom_call.1} parent=5 // pred_region
        %s182 = ssub.s32 %s22, 1
        // Predicated region
        $region13: #{tpu_custom_call.1} parent=11 // pred_check
          %p183 = pneg %p69
        $region14: #{tpu_custom_call.1} parent=11 // pred_check_branch
          %185 = sbr.rel (%p183) target = $region16
        $region15: #{tpu_custom_call.1} parent=11 // pred_region
          %s187 = ssub.s32 2304, 2304
          %188 = vsyncadd [#allocation6], %s187
          %s189 = sshll.u32 [#allocation5], 4
          %s190 = int_to_ptr.vmem [resolvable:$true] %s189
          %195 = dma.hbm_to_vmem [thread:$0]  %s1, 2304, %s190, [#allocation6], 64, 64, 4
        $region16: #{tpu_custom_call.1} parent=11 // pred_fallthru
          _
        // Predicated region
        $region17: #{tpu_custom_call.1} parent=11 // pred_check
          %p196 = pneg %p90
        $region18: #{tpu_custom_call.1} parent=11 // pred_check_branch
          %198 = sbr.rel (%p196) target = $region20
        $region19: #{tpu_custom_call.1} parent=11 // pred_region
          _
        $region20: #{tpu_custom_call.1} parent=11 // pred_fallthru
          _
      $region12: #{tpu_custom_call.1} parent=5 // pred_fallthru
        _
      %p199 = scmp.lt.s32.totalorder %s22, 2
      // Predicated region
      $region21: #{tpu_custom_call.1} parent=5 // pred_check
        %p200 = pneg %p199
      $region22: #{tpu_custom_call.1} parent=5 // pred_check_branch
        %202 = sbr.rel (%p200) target = $region24
      $region23: #{tpu_custom_call.1} parent=5 // pred_region
        // Predicated region
        $region25: #{tpu_custom_call.1} parent=23 // pred_check
          %p203 = pneg %p42
        $region26: #{tpu_custom_call.1} parent=23 // pred_check_branch
          %205 = sbr.rel (%p203) target = $region28
        $region27: #{tpu_custom_call.1} parent=23 // pred_region
          %s206 = sand.u32 %s22, 1
          %s207 = scalar_lea.sflag [#allocation3], %s206
          %s208 = sand.u32 %s32, 1
          %s209 = smul.addr %s208, 64
          %s210 = scalar_lea.vmem [#allocation2], %s209
          %s212 = ssub.s32 1024, 1024
          %213 = vsyncadd %s207, %s212
          %s214 = smul.addr %s22, 16
          %s215 = smul.addr %s214, 64
          %s216 = scalar_lea.hbm %s0, %s215
          %s217 = sshll.u32 %s210, 4
          %s218 = int_to_ptr.vmem [resolvable:$true] %s217
          %223 = dma.hbm_to_vmem [thread:$0]  %s216, 1024, %s218, %s207, 256, 256, 16
        $region28: #{tpu_custom_call.1} parent=23 // pred_fallthru
          _
        // Predicated region
        $region29: #{tpu_custom_call.1} parent=23 // pred_check
          %p224 = pneg %p110
        $region30: #{tpu_custom_call.1} parent=23 // pred_check_branch
          %226 = sbr.rel (%p224) target = $region32
        $region31: #{tpu_custom_call.1} parent=23 // pred_region
          %s227 = sand.u32 %s22, 1
          %s228 = scalar_lea.sflag [#allocation3], %s227
          %s229 = sand.u32 %s100, 1
          %s230 = smul.addr %s229, 24
          %s231 = scalar_lea.vmem [#allocation7], %s230
          %s233 = ssub.s32 384, 384
          %234 = vsyncadd %s228, %s233
          %s235 = smul.addr %s22, 3
          %s236 = smul.addr %s235, 128
          %s237 = scalar_lea.hbm %s3, %s236
          %s239 = sshll.u32 %s231, 4
          %s240 = int_to_ptr.vmem [resolvable:$true] %s239
          %242 = dma.hbm_to_vmem [thread:$0]  %s237, 384, %s240, %s228
        $region32: #{tpu_custom_call.1} parent=23 // pred_fallthru
          _
      $region24: #{tpu_custom_call.1} parent=5 // pred_fallthru
        _
      %p243 = scmp.le.s32.totalorder 1, %s22
      %p244 = scmp.lt.s32.totalorder %s22, 3
      %p245 = pnand %p243, %p244
      %p246 = pneg %p245
      // Predicated region
      $region33: #{tpu_custom_call.1} parent=5 // pred_check
        _
      $region34: #{tpu_custom_call.1} parent=5 // pred_check_branch
        %248 = sbr.rel (%p245) target = $region36
      $region35: #{tpu_custom_call.1} parent=5 // pred_region
        %s249 = ssub.s32 %s22, 1
        %s250 = sand.u32 %s27, 1
        %s251 = scalar_lea.sflag [#allocation3], %s250
        %s252 = sand.u32 %s35, 1
        %s253 = smul.addr %s252, 64
        %s254 = scalar_lea.vmem [#allocation2], %s253
        // Predicated region
        $region37: #{tpu_custom_call.1} parent=35 // pred_check
          %p255 = pneg %p48
        $region38: #{tpu_custom_call.1} parent=35 // pred_check_branch
          %257 = sbr.rel (%p255) target = $region40
        $region39: #{tpu_custom_call.1} parent=35 // pred_region
          %258 = dma.done %s251, 1024
        $region40: #{tpu_custom_call.1} parent=35 // pred_fallthru
          _
        // Predicated region
        $region41: #{tpu_custom_call.1} parent=35 // pred_check
          %p259 = pneg %p69
        $region42: #{tpu_custom_call.1} parent=35 // pred_check_branch
          %261 = sbr.rel (%p259) target = $region44
        $region43: #{tpu_custom_call.1} parent=35 // pred_region
          %262 = dma.done [#allocation6], 2304
        $region44: #{tpu_custom_call.1} parent=35 // pred_fallthru
          _
        %s263 = sand.u32 %s27, 1
        %s264 = scalar_lea.sflag [#allocation3], %s263
        %s265 = sand.u32 %s103, 1
        %s266 = smul.addr %s265, 24
        %s267 = scalar_lea.vmem [#allocation7], %s266
        // Predicated region
        $region45: #{tpu_custom_call.1} parent=35 // pred_check
          %p268 = pneg %p116
        $region46: #{tpu_custom_call.1} parent=35 // pred_check_branch
          %270 = sbr.rel (%p268) target = $region48
        $region47: #{tpu_custom_call.1} parent=35 // pred_region
          %271 = dma.done %s264, 384
        $region48: #{tpu_custom_call.1} parent=35 // pred_fallthru
          _
        %s272 = sand.u32 %s27, 1
        %s273 = scalar_lea.sflag [#allocation3], %s272
        %s274 = sand.u32 %s35, 1
        %s275 = smul.addr %s274, 64
        %s276 = scalar_lea.vmem [#allocation2], %s275
        %p277 = pneg %p48
        %p278 = pneg %p45
        %p279 = pneg %p69
        %p280 = pneg %p66
        %p281 = pneg %p90
        %p282 = pneg %p87
        %s283 = sand.u32 %s27, 1
        %s284 = scalar_lea.sflag [#allocation3], %s283
        %s285 = sand.u32 %s103, 1
        %s286 = smul.addr %s285, 24
        %s287 = scalar_lea.vmem [#allocation7], %s286
        %p288 = pneg %p116
        %p289 = pneg %p113
        %p290 = pneg %p142
        %p291 = pneg %p139
        %s292 = sand.u32 %s129, 1
        %s293 = scalar_lea.sflag [#allocation4], %s292
        %s294 = sand.u32 %s129, 1
        %s295 = smul.addr %s294, 24
        %s296 = scalar_lea.vmem [#allocation8], %s295
        %p297 = pneg %p168
        %p298 = pneg %p165
        %s299 = sand.u32 %s155, 1
        %s300 = scalar_lea.sflag [#allocation10], %s299
        %s301 = sand.u32 %s155, 1
        %s302 = smul.addr %s301, 24
        %s303 = scalar_lea.vmem [#allocation9], %s302
        %v305 = vld [vmem:[%s254] sm:$0xff]
        %v306 = vld [vmem:[%s254 + $0x8] sm:$0xff]
        %v307 = vld [vmem:[%s254 + $0x10] sm:$0xff]
        %v308 = vld [vmem:[%s254 + $0x18] sm:$0xff]
        %v309 = vld [vmem:[%s254 + $0x20] sm:$0xff]
        %v310 = vld [vmem:[%s254 + $0x28] sm:$0xff]
        %v311 = vld [vmem:[%s254 + $0x30] sm:$0xff]
        %v312 = vld [vmem:[%s254 + $0x38] sm:$0xff]
        %v313 = vld [vmem:[#allocation5] sm:$0xf]
        %v314 = vld [vmem:[#allocation5 + $0x4] sm:$0xf]
        %v315 = vld [vmem:[#allocation5 + $0x8] sm:$0xf]
        %v316 = vld [vmem:[#allocation5 + $0xc] sm:$0xf]
        %s317 = scalar_lea.vmem [#allocation5], 16
        %v318 = vld [vmem:[%s317] sm:$0xf]
        %v319 = vld [vmem:[%s317 + $0x4] sm:$0xf]
        %v320 = vld [vmem:[%s317 + $0x8] sm:$0xf]
        %v321 = vld [vmem:[%s317 + $0xc] sm:$0xf]
        %v326 = vunpack.c.l.b16 %v318
        %v327 = vunpack.c.l.b16 %v319
        %v328 = vunpack.c.l.b16 %v320
        %v329 = vunpack.c.l.b16 %v321
        %v330 = vpack.c.b16 %v327, %v326
        %v331 = vpack.c.b16 %v329, %v328
        %v340 = vunpack.c.l.b16 %v305
        %v341 = vunpack.c.h.b16 %v305
        %v342 = vunpack.c.l.b16 %v306
        %v343 = vunpack.c.h.b16 %v306
        %v344 = vunpack.c.l.b16 %v307
        %v345 = vunpack.c.h.b16 %v307
        %v346 = vunpack.c.l.b16 %v308
        %v347 = vunpack.c.h.b16 %v308
        %v348 = vunpack.c.l.b16 %v309
        %v349 = vunpack.c.h.b16 %v309
        %v350 = vunpack.c.l.b16 %v310
        %v351 = vunpack.c.h.b16 %v310
        %v352 = vunpack.c.l.b16 %v311
        %v353 = vunpack.c.h.b16 %v311
        %v354 = vunpack.c.l.b16 %v312
        %v355 = vunpack.c.h.b16 %v312
        %v356 = vpack.c.b16 %v344, %v340
        %v357 = vpack.c.b16 %v345, %v341
        %v358 = vpack.c.b16 %v346, %v342
        %v359 = vpack.c.b16 %v347, %v343
        %v360 = vpack.c.b16 %v352, %v348
        %v361 = vpack.c.b16 %v353, %v349
        %v362 = vpack.c.b16 %v354, %v350
        %v363 = vpack.c.b16 %v355, %v351
        %364 = vrot.lane.b32.xlu0 %v356, 127
        %v365 = vpop.permute.xlu0 %364
        %366 = vrot.lane.b32.xlu0 %v357, 127
        %v367 = vpop.permute.xlu0 %366
        %368 = vrot.lane.b32.xlu0 %v358, 127
        %v369 = vpop.permute.xlu0 %368
        %370 = vrot.lane.b32.xlu0 %v359, 127
        %v371 = vpop.permute.xlu0 %370
        %372 = vrot.lane.b32.xlu0 %v360, 127
        %v373 = vpop.permute.xlu0 %372
        %374 = vrot.lane.b32.xlu0 %v361, 127
        %v375 = vpop.permute.xlu0 %374
        %376 = vrot.lane.b32.xlu0 %v362, 127
        %v377 = vpop.permute.xlu0 %376
        %378 = vrot.lane.b32.xlu0 %v363, 127
        %v379 = vpop.permute.xlu0 %378
        %vm380 = vcmask 1039360
        %v381 = vsel %vm380, %v365, %v367
        %v382 = vsel %vm380, %v367, %v369
        %v383 = vsel %vm380, %v369, %v371
        %v384 = vsel %vm380, %v373, %v375
        %v385 = vsel %vm380, %v375, %v377
        %v386 = vsel %vm380, %v377, %v379
        %vm393 = vcmask 261120
        %v395 = vsel %vm393, %v330, 0
        %v398 = vsel %vm393, %v331, 0
        %400 = vmatprep.subr.bf16.mxu0 %v382
        %401 = vmatpush1.bf16.msra.mxu0 %v381
        %402 = vmatprep.subr.bf16.mxu0 %v385
        %403 = vmatpush1.bf16.msra.mxu0 %v384
        %404 = vmatprep.subr.bf16.mxu0 0
        %405 = vmatpush1.bf16.msra.mxu0 0
        %406 = vmatprep.subr.bf16.mxu0 0
        %407 = vmatpush1.bf16.msra.mxu0 0
        %408 = vmatprep.subr.bf16.mxu0 0
        %409 = vmatpush1.bf16.msra.mxu0 0
        %410 = vmatprep.subr.bf16.mxu0 0
        %411 = vmatpush1.bf16.msra.mxu0 0
        %412 = vmatprep.subr.bf16.mxu0 0
        %413 = vmatpush1.bf16.msra.mxu0 0
        %414 = vmatprep.subr.bf16.mxu0 0
        %415 = vmatpush1.bf16.msra.mxu0 0
        %416 = vmatprep.subr.bf16.mxu0 0
        %417 = vmatpush1.bf16.msra.mxu0 0
        %418 = vmatprep.subr.bf16.mxu0 0
        %419 = vmatpush1.bf16.msra.mxu0 0
        %420 = vmatprep.subr.bf16.mxu0 0
        %421 = vmatpush1.bf16.msra.mxu0 0
        %422 = vmatprep.subr.bf16.mxu0 0
        %423 = vmatpush1.bf16.msra.mxu0 0
        %424 = vmatprep.subr.bf16.mxu0 0
        %425 = vmatpush1.bf16.msra.mxu0 0
        %426 = vmatprep.subr.bf16.mxu0 0
        %427 = vmatpush1.bf16.msra.mxu0 0
        %428 = vmatprep.subr.bf16.mxu0 0
        %429 = vmatpush1.bf16.msra.mxu0 0
        %430 = vmatprep.subr.bf16.mxu0 0
        %431 = vmatpush1.bf16.msra.mxu0 0
        %432 = vmatprep.mubr.bf16.mxu0 0
        %433 = vmatmul.mubr.bf16.gmra.mrb[0].mxu0 %v395
        %v434 = vpop.f32.mrb[0].mxu0
        %v435 = vadd.f32 0.0, %v434
        %v436 = vpop.f32.mrb[0].mxu0
        %v437 = vadd.f32 0.0, %v436
        %v438 = vpop.f32.mrb[0].mxu0
        %v439 = vadd.f32 0.0, %v438
        %v440 = vpop.f32.mrb[0].mxu0
        %v441 = vadd.f32 0.0, %v440
        %442 = vmatprep.mubr.bf16.mxu0 0
        %443 = vmatmul.mubr.bf16.gmra.mrb[0].mxu0 %v398
        %v444 = vpop.f32.mrb[0].mxu0
        %v445 = vadd.f32 0.0, %v444
        %v446 = vpop.f32.mrb[0].mxu0
        %v447 = vadd.f32 0.0, %v446
        %v448 = vpop.f32.mrb[0].mxu0
        %v449 = vadd.f32 0.0, %v448
        %v450 = vpop.f32.mrb[0].mxu0
        %v451 = vadd.f32 0.0, %v450
        %452 = vdwg.mxu0
        %453 = vmatprep.subr.bf16.mxu0 0
        %454 = vmatpush1.bf16.msra.mxu0 %v383
        %455 = vmatprep.subr.bf16.mxu0 0
        %456 = vmatpush1.bf16.msra.mxu0 %v386
        %457 = vmatprep.subr.bf16.mxu0 0
        %458 = vmatpush1.bf16.msra.mxu0 0
        %459 = vmatprep.subr.bf16.mxu0 0
        %460 = vmatpush1.bf16.msra.mxu0 0
        %461 = vmatprep.subr.bf16.mxu0 0
        %462 = vmatpush1.bf16.msra.mxu0 0
        %463 = vmatprep.subr.bf16.mxu0 0
        %464 = vmatpush1.bf16.msra.mxu0 0
        %465 = vmatprep.subr.bf16.mxu0 0
        %466 = vmatpush1.bf16.msra.mxu0 0
        %467 = vmatprep.subr.bf16.mxu0 0
        %468 = vmatpush1.bf16.msra.mxu0 0
        %469 = vmatprep.subr.bf16.mxu0 0
        %470 = vmatpush1.bf16.msra.mxu0 0
        %471 = vmatprep.subr.bf16.mxu0 0
        %472 = vmatpush1.bf16.msra.mxu0 0
        %473 = vmatprep.subr.bf16.mxu0 0
        %474 = vmatpush1.bf16.msra.mxu0 0
        %475 = vmatprep.subr.bf16.mxu0 0
        %476 = vmatpush1.bf16.msra.mxu0 0
        %477 = vmatprep.subr.bf16.mxu0 0
        %478 = vmatpush1.bf16.msra.mxu0 0
        %479 = vmatprep.subr.bf16.mxu0 0
        %480 = vmatpush1.bf16.msra.mxu0 0
        %481 = vmatprep.subr.bf16.mxu0 0
        %482 = vmatpush1.bf16.msra.mxu0 0
        %483 = vmatprep.subr.bf16.mxu0 0
        %484 = vmatpush1.bf16.msra.mxu0 0
        %485 = vmatprep.mubr.bf16.mxu0 0
        %486 = vmatmul.mubr.bf16.gmra.mrb[0].mxu0 %v395
        %v487 = vpop.f32.mrb[0].mxu0
        %v488 = vadd.f32 0.0, %v487
        %v489 = vpop.f32.mrb[0].mxu0
        %v490 = vpop.f32.mrb[0].mxu0
        %v491 = vadd.f32 0.0, %v490
        %v492 = vpop.f32.mrb[0].mxu0
        %493 = vmatprep.mubr.bf16.mxu0 0
        %494 = vmatmul.mubr.bf16.gmra.mrb[0].mxu0 %v398
        %v495 = vpop.f32.mrb[0].mxu0
        %v496 = vadd.f32 0.0, %v495
        %v497 = vpop.f32.mrb[0].mxu0
        %v498 = vpop.f32.mrb[0].mxu0
        %v499 = vadd.f32 0.0, %v498
        %v500 = vpop.f32.mrb[0].mxu0
        %501 = vdwg.mxu0
        %v506 = vunpack.c.l.b16 %v313
        %v507 = vunpack.c.l.b16 %v314
        %v508 = vunpack.c.l.b16 %v315
        %v509 = vunpack.c.l.b16 %v316
        %v510 = vpack.c.b16 %v507, %v506
        %v511 = vpack.c.b16 %v509, %v508
        %v519 = vsel %vm393, %v510, 0
        %v522 = vsel %vm393, %v511, 0
        %524 = vmatprep.subr.bf16.mxu0 %v357
        %525 = vmatpush1.bf16.msra.mxu0 %v356
        %526 = vmatprep.subr.bf16.mxu0 %v361
        %527 = vmatpush1.bf16.msra.mxu0 %v360
        %528 = vmatprep.subr.bf16.mxu0 0
        %529 = vmatpush1.bf16.msra.mxu0 0
        %530 = vmatprep.subr.bf16.mxu0 0
        %531 = vmatpush1.bf16.msra.mxu0 0
        %532 = vmatprep.subr.bf16.mxu0 0
        %533 = vmatpush1.bf16.msra.mxu0 0
        %534 = vmatprep.subr.bf16.mxu0 0
        %535 = vmatpush1.bf16.msra.mxu0 0
        %536 = vmatprep.subr.bf16.mxu0 0
        %537 = vmatpush1.bf16.msra.mxu0 0
        %538 = vmatprep.subr.bf16.mxu0 0
        %539 = vmatpush1.bf16.msra.mxu0 0
        %540 = vmatprep.subr.bf16.mxu0 0
        %541 = vmatpush1.bf16.msra.mxu0 0
        %542 = vmatprep.subr.bf16.mxu0 0
        %543 = vmatpush1.bf16.msra.mxu0 0
        %544 = vmatprep.subr.bf16.mxu0 0
        %545 = vmatpush1.bf16.msra.mxu0 0
        %546 = vmatprep.subr.bf16.mxu0 0
        %547 = vmatpush1.bf16.msra.mxu0 0
        %548 = vmatprep.subr.bf16.mxu0 0
        %549 = vmatpush1.bf16.msra.mxu0 0
        %550 = vmatprep.subr.bf16.mxu0 0
        %551 = vmatpush1.bf16.msra.mxu0 0
        %552 = vmatprep.subr.bf16.mxu0 0
        %553 = vmatpush1.bf16.msra.mxu0 0
        %554 = vmatprep.subr.bf16.mxu0 0
        %555 = vmatpush1.bf16.msra.mxu0 0
        %556 = vmatprep.mubr.bf16.mxu0 0
        %557 = vmatmul.mubr.bf16.gmra.mrb[0].mxu0 %v519
        %v558 = vpop.f32.mrb[0].mxu0
        %v559 = vadd.f32 %v435, %v558
        %v560 = vpop.f32.mrb[0].mxu0
        %v561 = vadd.f32 %v437, %v560
        %v562 = vpop.f32.mrb[0].mxu0
        %v563 = vadd.f32 %v439, %v562
        %v564 = vpop.f32.mrb[0].mxu0
        %v565 = vadd.f32 %v441, %v564
        %566 = vmatprep.mubr.bf16.mxu0 0
        %567 = vmatmul.mubr.bf16.gmra.mrb[0].mxu0 %v522
        %v568 = vpop.f32.mrb[0].mxu0
        %v569 = vadd.f32 %v445, %v568
        %v570 = vpop.f32.mrb[0].mxu0
        %v571 = vadd.f32 %v447, %v570
        %v572 = vpop.f32.mrb[0].mxu0
        %v573 = vadd.f32 %v449, %v572
        %v574 = vpop.f32.mrb[0].mxu0
        %v575 = vadd.f32 %v451, %v574
        %576 = vdwg.mxu0
        %577 = vmatprep.subr.bf16.mxu0 0
        %578 = vmatpush1.bf16.msra.mxu0 %v358
        %579 = vmatprep.subr.bf16.mxu0 0
        %580 = vmatpush1.bf16.msra.mxu0 %v362
        %581 = vmatprep.subr.bf16.mxu0 0
        %582 = vmatpush1.bf16.msra.mxu0 0
        %583 = vmatprep.subr.bf16.mxu0 0
        %584 = vmatpush1.bf16.msra.mxu0 0
        %585 = vmatprep.subr.bf16.mxu0 0
        %586 = vmatpush1.bf16.msra.mxu0 0
        %587 = vmatprep.subr.bf16.mxu0 0
        %588 = vmatpush1.bf16.msra.mxu0 0
        %589 = vmatprep.subr.bf16.mxu0 0
        %590 = vmatpush1.bf16.msra.mxu0 0
        %591 = vmatprep.subr.bf16.mxu0 0
        %592 = vmatpush1.bf16.msra.mxu0 0
        %593 = vmatprep.subr.bf16.mxu0 0
        %594 = vmatpush1.bf16.msra.mxu0 0
        %595 = vmatprep.subr.bf16.mxu0 0
        %596 = vmatpush1.bf16.msra.mxu0 0
        %597 = vmatprep.subr.bf16.mxu0 0
        %598 = vmatpush1.bf16.msra.mxu0 0
        %599 = vmatprep.subr.bf16.mxu0 0
        %600 = vmatpush1.bf16.msra.mxu0 0
        %601 = vmatprep.subr.bf16.mxu0 0
        %602 = vmatpush1.bf16.msra.mxu0 0
        %603 = vmatprep.subr.bf16.mxu0 0
        %604 = vmatpush1.bf16.msra.mxu0 0
        %605 = vmatprep.subr.bf16.mxu0 0
        %606 = vmatpush1.bf16.msra.mxu0 0
        %607 = vmatprep.subr.bf16.mxu0 0
        %608 = vmatpush1.bf16.msra.mxu0 0
        %609 = vmatprep.mubr.bf16.mxu0 0
        %610 = vmatmul.mubr.bf16.gmra.mrb[0].mxu0 %v519
        %v611 = vpop.f32.mrb[0].mxu0
        %v612 = vadd.f32 %v488, %v611
        %v613 = vpop.f32.mrb[0].mxu0
        %v614 = vpop.f32.mrb[0].mxu0
        %v615 = vadd.f32 %v491, %v614
        %v616 = vpop.f32.mrb[0].mxu0
        %617 = vmatprep.mubr.bf16.mxu0 0
        %618 = vmatmul.mubr.bf16.gmra.mrb[0].mxu0 %v522
        %v619 = vpop.f32.mrb[0].mxu0
        %v620 = vadd.f32 %v496, %v619
        %v621 = vpop.f32.mrb[0].mxu0
        %v622 = vpop.f32.mrb[0].mxu0
        %v623 = vadd.f32 %v499, %v622
        %v624 = vpop.f32.mrb[0].mxu0
        %625 = vdwg.mxu0
        %s626 = scalar_lea.vmem [#allocation5], 32
        %v627 = vld [vmem:[%s626] sm:$0xf]
        %v628 = vld [vmem:[%s626 + $0x4] sm:$0xf]
        %v629 = vld [vmem:[%s626 + $0x8] sm:$0xf]
        %v630 = vld [vmem:[%s626 + $0xc] sm:$0xf]
        %v635 = vunpack.c.l.b16 %v627
        %v636 = vunpack.c.l.b16 %v628
        %v637 = vunpack.c.l.b16 %v629
        %v638 = vunpack.c.l.b16 %v630
        %v639 = vpack.c.b16 %v636, %v635
        %v640 = vpack.c.b16 %v638, %v637
        %641 = vrot.lane.b32.xlu0 %v356, 126
        %v642 = vpop.permute.xlu0 %641
        %643 = vrot.lane.b32.xlu0 %v357, 126
        %v644 = vpop.permute.xlu0 %643
        %645 = vrot.lane.b32.xlu0 %v358, 126
        %v646 = vpop.permute.xlu0 %645
        %647 = vrot.lane.b32.xlu0 %v359, 126
        %v648 = vpop.permute.xlu0 %647
        %649 = vrot.lane.b32.xlu0 %v360, 126
        %v650 = vpop.permute.xlu0 %649
        %651 = vrot.lane.b32.xlu0 %v361, 126
        %v652 = vpop.permute.xlu0 %651
        %653 = vrot.lane.b32.xlu0 %v362, 126
        %v654 = vpop.permute.xlu0 %653
        %655 = vrot.lane.b32.xlu0 %v363, 126
        %v656 = vpop.permute.xlu0 %655
        %vm657 = vcmask 1031168
        %v658 = vsel %vm657, %v642, %v644
        %v659 = vsel %vm657, %v644, %v646
        %v660 = vsel %vm657, %v646, %v648
        %v661 = vsel %vm657, %v650, %v652
        %v662 = vsel %vm657, %v652, %v654
        %v663 = vsel %vm657, %v654, %v656
        %v671 = vsel %vm393, %v639, 0
        %v674 = vsel %vm393, %v640, 0
        %676 = vmatprep.subr.bf16.mxu0 %v659
        %677 = vmatpush1.bf16.msra.mxu0 %v658
        %678 = vmatprep.subr.bf16.mxu0 %v662
        %679 = vmatpush1.bf16.msra.mxu0 %v661
        %680 = vmatprep.subr.bf16.mxu0 0
        %681 = vmatpush1.bf16.msra.mxu0 0
        %682 = vmatprep.subr.bf16.mxu0 0
        %683 = vmatpush1.bf16.msra.mxu0 0
        %684 = vmatprep.subr.bf16.mxu0 0
        %685 = vmatpush1.bf16.msra.mxu0 0
        %686 = vmatprep.subr.bf16.mxu0 0
        %687 = vmatpush1.bf16.msra.mxu0 0
        %688 = vmatprep.subr.bf16.mxu0 0
        %689 = vmatpush1.bf16.msra.mxu0 0
        %690 = vmatprep.subr.bf16.mxu0 0
        %691 = vmatpush1.bf16.msra.mxu0 0
        %692 = vmatprep.subr.bf16.mxu0 0
        %693 = vmatpush1.bf16.msra.mxu0 0
        %694 = vmatprep.subr.bf16.mxu0 0
        %695 = vmatpush1.bf16.msra.mxu0 0
        %696 = vmatprep.subr.bf16.mxu0 0
        %697 = vmatpush1.bf16.msra.mxu0 0
        %698 = vmatprep.subr.bf16.mxu0 0
        %699 = vmatpush1.bf16.msra.mxu0 0
        %700 = vmatprep.subr.bf16.mxu0 0
        %701 = vmatpush1.bf16.msra.mxu0 0
        %702 = vmatprep.subr.bf16.mxu0 0
        %703 = vmatpush1.bf16.msra.mxu0 0
        %704 = vmatprep.subr.bf16.mxu0 0
        %705 = vmatpush1.bf16.msra.mxu0 0
        %706 = vmatprep.subr.bf16.mxu0 0
        %707 = vmatpush1.bf16.msra.mxu0 0
        %708 = vmatprep.mubr.bf16.mxu0 0
        %709 = vmatmul.mubr.bf16.gmra.mrb[0].mxu0 %v671
        %v710 = vpop.f32.mrb[0].mxu0
        %v711 = vadd.f32 0.0, %v710
        %v712 = vpop.f32.mrb[0].mxu0
        %v713 = vadd.f32 0.0, %v712
        %v714 = vpop.f32.mrb[0].mxu0
        %v715 = vadd.f32 0.0, %v714
        %v716 = vpop.f32.mrb[0].mxu0
        %v717 = vadd.f32 0.0, %v716
        %718 = vmatprep.mubr.bf16.mxu0 0
        %719 = vmatmul.mubr.bf16.gmra.mrb[0].mxu0 %v674
        %v720 = vpop.f32.mrb[0].mxu0
        %v721 = vadd.f32 0.0, %v720
        %v722 = vpop.f32.mrb[0].mxu0
        %v723 = vadd.f32 0.0, %v722
        %v724 = vpop.f32.mrb[0].mxu0
        %v725 = vadd.f32 0.0, %v724
        %v726 = vpop.f32.mrb[0].mxu0
        %v727 = vadd.f32 0.0, %v726
        %728 = vdwg.mxu0
        %729 = vmatprep.subr.bf16.mxu0 0
        %730 = vmatpush1.bf16.msra.mxu0 %v660
        %731 = vmatprep.subr.bf16.mxu0 0
        %732 = vmatpush1.bf16.msra.mxu0 %v663
        %733 = vmatprep.subr.bf16.mxu0 0
        %734 = vmatpush1.bf16.msra.mxu0 0
        %735 = vmatprep.subr.bf16.mxu0 0
        %736 = vmatpush1.bf16.msra.mxu0 0
        %737 = vmatprep.subr.bf16.mxu0 0
        %738 = vmatpush1.bf16.msra.mxu0 0
        %739 = vmatprep.subr.bf16.mxu0 0
        %740 = vmatpush1.bf16.msra.mxu0 0
        %741 = vmatprep.subr.bf16.mxu0 0
        %742 = vmatpush1.bf16.msra.mxu0 0
        %743 = vmatprep.subr.bf16.mxu0 0
        %744 = vmatpush1.bf16.msra.mxu0 0
        %745 = vmatprep.subr.bf16.mxu0 0
        %746 = vmatpush1.bf16.msra.mxu0 0
        %747 = vmatprep.subr.bf16.mxu0 0
        %748 = vmatpush1.bf16.msra.mxu0 0
        %749 = vmatprep.subr.bf16.mxu0 0
        %750 = vmatpush1.bf16.msra.mxu0 0
        %751 = vmatprep.subr.bf16.mxu0 0
        %752 = vmatpush1.bf16.msra.mxu0 0
        %753 = vmatprep.subr.bf16.mxu0 0
        %754 = vmatpush1.bf16.msra.mxu0 0
        %755 = vmatprep.subr.bf16.mxu0 0
        %756 = vmatpush1.bf16.msra.mxu0 0
        %757 = vmatprep.subr.bf16.mxu0 0
        %758 = vmatpush1.bf16.msra.mxu0 0
        %759 = vmatprep.subr.bf16.mxu0 0
        %760 = vmatpush1.bf16.msra.mxu0 0
        %761 = vmatprep.mubr.bf16.mxu0 0
        %762 = vmatmul.mubr.bf16.gmra.mrb[0].mxu0 %v671
        %v763 = vpop.f32.mrb[0].mxu0
        %v764 = vadd.f32 0.0, %v763
        %v765 = vpop.f32.mrb[0].mxu0
        %v766 = vpop.f32.mrb[0].mxu0
        %v767 = vadd.f32 0.0, %v766
        %v768 = vpop.f32.mrb[0].mxu0
        %769 = vmatprep.mubr.bf16.mxu0 0
        %770 = vmatmul.mubr.bf16.gmra.mrb[0].mxu0 %v674
        %v771 = vpop.f32.mrb[0].mxu0
        %v772 = vadd.f32 0.0, %v771
        %v773 = vpop.f32.mrb[0].mxu0
        %v774 = vpop.f32.mrb[0].mxu0
        %v775 = vadd.f32 0.0, %v774
        %v776 = vpop.f32.mrb[0].mxu0
        %777 = vdwg.mxu0
        %v778 = vadd.f32 %v559, %v711
        %v779 = vadd.f32 %v561, %v713
        %v780 = vadd.f32 %v612, %v764
        %v781 = vadd.f32 %v563, %v715
        %v782 = vadd.f32 %v565, %v717
        %v783 = vadd.f32 %v615, %v767
        %v784 = vadd.f32 %v569, %v721
        %v785 = vadd.f32 %v571, %v723
        %v786 = vadd.f32 %v620, %v772
        %v787 = vadd.f32 %v573, %v725
        %v788 = vadd.f32 %v575, %v727
        %v789 = vadd.f32 %v623, %v775
        %s790 = scalar_lea.vmem [#allocation5], 48
        %v791 = vld [vmem:[%s790] sm:$0xf]
        %v792 = vld [vmem:[%s790 + $0x4] sm:$0xf]
        %v793 = vld [vmem:[%s790 + $0x8] sm:$0xf]
        %v794 = vld [vmem:[%s790 + $0xc] sm:$0xf]
        %v799 = vunpack.c.l.b16 %v791
        %v800 = vunpack.c.l.b16 %v792
        %v801 = vunpack.c.l.b16 %v793
        %v802 = vunpack.c.l.b16 %v794
        %v803 = vpack.c.b16 %v800, %v799
        %v804 = vpack.c.b16 %v802, %v801
        %805 = vrot.lane.b32.xlu0 %v356, 110
        %v806 = vpop.permute.xlu0 %805
        %807 = vrot.lane.b32.xlu0 %v357, 110
        %v808 = vpop.permute.xlu0 %807
        %809 = vrot.lane.b32.xlu0 %v358, 110
        %v810 = vpop.permute.xlu0 %809
        %811 = vrot.lane.b32.xlu0 %v359, 110
        %v812 = vpop.permute.xlu0 %811
        %813 = vrot.lane.b32.xlu0 %v360, 110
        %v814 = vpop.permute.xlu0 %813
        %815 = vrot.lane.b32.xlu0 %v361, 110
        %v816 = vpop.permute.xlu0 %815
        %817 = vrot.lane.b32.xlu0 %v362, 110
        %v818 = vpop.permute.xlu0 %817
        %819 = vrot.lane.b32.xlu0 %v363, 110
        %v820 = vpop.permute.xlu0 %819
        %vm821 = vcmask 900096
        %v822 = vsel %vm821, %v806, %v808
        %v823 = vsel %vm821, %v808, %v810
        %v824 = vsel %vm821, %v810, %v812
        %v825 = vsel %vm821, %v814, %v816
        %v826 = vsel %vm821, %v816, %v818
        %v827 = vsel %vm821, %v818, %v820
        %v835 = vsel %vm393, %v803, 0
        %v838 = vsel %vm393, %v804, 0
        %840 = vmatprep.subr.bf16.mxu0 %v823
        %841 = vmatpush1.bf16.msra.mxu0 %v822
        %842 = vmatprep.subr.bf16.mxu0 %v826
        %843 = vmatpush1.bf16.msra.mxu0 %v825
        %844 = vmatprep.subr.bf16.mxu0 0
        %845 = vmatpush1.bf16.msra.mxu0 0
        %846 = vmatprep.subr.bf16.mxu0 0
        %847 = vmatpush1.bf16.msra.mxu0 0
        %848 = vmatprep.subr.bf16.mxu0 0
        %849 = vmatpush1.bf16.msra.mxu0 0
        %850 = vmatprep.subr.bf16.mxu0 0
        %851 = vmatpush1.bf16.msra.mxu0 0
        %852 = vmatprep.subr.bf16.mxu0 0
        %853 = vmatpush1.bf16.msra.mxu0 0
        %854 = vmatprep.subr.bf16.mxu0 0
        %855 = vmatpush1.bf16.msra.mxu0 0
        %856 = vmatprep.subr.bf16.mxu0 0
        %857 = vmatpush1.bf16.msra.mxu0 0
        %858 = vmatprep.subr.bf16.mxu0 0
        %859 = vmatpush1.bf16.msra.mxu0 0
        %860 = vmatprep.subr.bf16.mxu0 0
        %861 = vmatpush1.bf16.msra.mxu0 0
        %862 = vmatprep.subr.bf16.mxu0 0
        %863 = vmatpush1.bf16.msra.mxu0 0
        %864 = vmatprep.subr.bf16.mxu0 0
        %865 = vmatpush1.bf16.msra.mxu0 0
        %866 = vmatprep.subr.bf16.mxu0 0
        %867 = vmatpush1.bf16.msra.mxu0 0
        %868 = vmatprep.subr.bf16.mxu0 0
        %869 = vmatpush1.bf16.msra.mxu0 0
        %870 = vmatprep.subr.bf16.mxu0 0
        %871 = vmatpush1.bf16.msra.mxu0 0
        %872 = vmatprep.mubr.bf16.mxu0 0
        %873 = vmatmul.mubr.bf16.gmra.mrb[0].mxu0 %v835
        %v874 = vpop.f32.mrb[0].mxu0
        %v875 = vadd.f32 0.0, %v874
        %v876 = vpop.f32.mrb[0].mxu0
        %v877 = vadd.f32 0.0, %v876
        %v878 = vpop.f32.mrb[0].mxu0
        %v879 = vadd.f32 0.0, %v878
        %v880 = vpop.f32.mrb[0].mxu0
        %v881 = vadd.f32 0.0, %v880
        %882 = vmatprep.mubr.bf16.mxu0 0
        %883 = vmatmul.mubr.bf16.gmra.mrb[0].mxu0 %v838
        %v884 = vpop.f32.mrb[0].mxu0
        %v885 = vadd.f32 0.0, %v884
        %v886 = vpop.f32.mrb[0].mxu0
        %v887 = vadd.f32 0.0, %v886
        %v888 = vpop.f32.mrb[0].mxu0
        %v889 = vadd.f32 0.0, %v888
        %v890 = vpop.f32.mrb[0].mxu0
        %v891 = vadd.f32 0.0, %v890
        %892 = vdwg.mxu0
        %893 = vmatprep.subr.bf16.mxu0 0
        %894 = vmatpush1.bf16.msra.mxu0 %v824
        %895 = vmatprep.subr.bf16.mxu0 0
        %896 = vmatpush1.bf16.msra.mxu0 %v827
        %897 = vmatprep.subr.bf16.mxu0 0
        %898 = vmatpush1.bf16.msra.mxu0 0
        %899 = vmatprep.subr.bf16.mxu0 0
        %900 = vmatpush1.bf16.msra.mxu0 0
        %901 = vmatprep.subr.bf16.mxu0 0
        %902 = vmatpush1.bf16.msra.mxu0 0
        %903 = vmatprep.subr.bf16.mxu0 0
        %904 = vmatpush1.bf16.msra.mxu0 0
        %905 = vmatprep.subr.bf16.mxu0 0
        %906 = vmatpush1.bf16.msra.mxu0 0
        %907 = vmatprep.subr.bf16.mxu0 0
        %908 = vmatpush1.bf16.msra.mxu0 0
        %909 = vmatprep.subr.bf16.mxu0 0
        %910 = vmatpush1.bf16.msra.mxu0 0
        %911 = vmatprep.subr.bf16.mxu0 0
        %912 = vmatpush1.bf16.msra.mxu0 0
        %913 = vmatprep.subr.bf16.mxu0 0
        %914 = vmatpush1.bf16.msra.mxu0 0
        %915 = vmatprep.subr.bf16.mxu0 0
        %916 = vmatpush1.bf16.msra.mxu0 0
        %917 = vmatprep.subr.bf16.mxu0 0
        %918 = vmatpush1.bf16.msra.mxu0 0
        %919 = vmatprep.subr.bf16.mxu0 0
        %920 = vmatpush1.bf16.msra.mxu0 0
        %921 = vmatprep.subr.bf16.mxu0 0
        %922 = vmatpush1.bf16.msra.mxu0 0
        %923 = vmatprep.subr.bf16.mxu0 0
        %924 = vmatpush1.bf16.msra.mxu0 0
        %925 = vmatprep.mubr.bf16.mxu0 0
        %926 = vmatmul.mubr.bf16.gmra.mrb[0].mxu0 %v835
        %v927 = vpop.f32.mrb[0].mxu0
        %v928 = vadd.f32 0.0, %v927
        %v929 = vpop.f32.mrb[0].mxu0
        %v930 = vpop.f32.mrb[0].mxu0
        %v931 = vadd.f32 0.0, %v930
        %v932 = vpop.f32.mrb[0].mxu0
        %933 = vmatprep.mubr.bf16.mxu0 0
        %934 = vmatmul.mubr.bf16.gmra.mrb[0].mxu0 %v838
        %v935 = vpop.f32.mrb[0].mxu0
        %v936 = vadd.f32 0.0, %v935
        %v937 = vpop.f32.mrb[0].mxu0
        %v938 = vpop.f32.mrb[0].mxu0
        %v939 = vadd.f32 0.0, %v938
        %v940 = vpop.f32.mrb[0].mxu0
        %941 = vdwg.mxu0
        %v942 = vadd.f32 %v778, %v875
        %v943 = vadd.f32 %v779, %v877
        %v944 = vadd.f32 %v780, %v928
        %v945 = vadd.f32 %v781, %v879
        %v946 = vadd.f32 %v782, %v881
        %v947 = vadd.f32 %v783, %v931
        %v948 = vadd.f32 %v784, %v885
        %v949 = vadd.f32 %v785, %v887
        %v950 = vadd.f32 %v786, %v936
        %v951 = vadd.f32 %v787, %v889
        %v952 = vadd.f32 %v788, %v891
        %v953 = vadd.f32 %v789, %v939
        %s954 = scalar_lea.vmem [#allocation5], 64
        %v955 = vld [vmem:[%s954] sm:$0xf]
        %v956 = vld [vmem:[%s954 + $0x4] sm:$0xf]
        %v957 = vld [vmem:[%s954 + $0x8] sm:$0xf]
        %v958 = vld [vmem:[%s954 + $0xc] sm:$0xf]
        %v963 = vunpack.c.l.b16 %v955
        %v964 = vunpack.c.l.b16 %v956
        %v965 = vunpack.c.l.b16 %v957
        %v966 = vunpack.c.l.b16 %v958
        %v967 = vpack.c.b16 %v964, %v963
        %v968 = vpack.c.b16 %v966, %v965
        %969 = vrot.lane.b32.xlu0 %v356, 109
        %v970 = vpop.permute.xlu0 %969
        %971 = vrot.lane.b32.xlu0 %v357, 109
        %v972 = vpop.permute.xlu0 %971
        %973 = vrot.lane.b32.xlu0 %v358, 109
        %v974 = vpop.permute.xlu0 %973
        %975 = vrot.lane.b32.xlu0 %v359, 109
        %v976 = vpop.permute.xlu0 %975
        %977 = vrot.lane.b32.xlu0 %v360, 109
        %v978 = vpop.permute.xlu0 %977
        %979 = vrot.lane.b32.xlu0 %v361, 109
        %v980 = vpop.permute.xlu0 %979
        %981 = vrot.lane.b32.xlu0 %v362, 109
        %v982 = vpop.permute.xlu0 %981
        %983 = vrot.lane.b32.xlu0 %v363, 109
        %v984 = vpop.permute.xlu0 %983
        %vm985 = vcmask 891904
        %v986 = vsel %vm985, %v970, %v972
        %v987 = vsel %vm985, %v972, %v974
        %v988 = vsel %vm985, %v974, %v976
        %v989 = vsel %vm985, %v978, %v980
        %v990 = vsel %vm985, %v980, %v982
        %v991 = vsel %vm985, %v982, %v984
        %v999 = vsel %vm393, %v967, 0
        %v1002 = vsel %vm393, %v968, 0
        %1004 = vmatprep.subr.bf16.mxu0 %v987
        %1005 = vmatpush1.bf16.msra.mxu0 %v986
        %1006 = vmatprep.subr.bf16.mxu0 %v990
        %1007 = vmatpush1.bf16.msra.mxu0 %v989
        %1008 = vmatprep.subr.bf16.mxu0 0
        %1009 = vmatpush1.bf16.msra.mxu0 0
        %1010 = vmatprep.subr.bf16.mxu0 0
        %1011 = vmatpush1.bf16.msra.mxu0 0
        %1012 = vmatprep.subr.bf16.mxu0 0
        %1013 = vmatpush1.bf16.msra.mxu0 0
        %1014 = vmatprep.subr.bf16.mxu0 0
        %1015 = vmatpush1.bf16.msra.mxu0 0
        %1016 = vmatprep.subr.bf16.mxu0 0
        %1017 = vmatpush1.bf16.msra.mxu0 0
        %1018 = vmatprep.subr.bf16.mxu0 0
        %1019 = vmatpush1.bf16.msra.mxu0 0
        %1020 = vmatprep.subr.bf16.mxu0 0
        %1021 = vmatpush1.bf16.msra.mxu0 0
        %1022 = vmatprep.subr.bf16.mxu0 0
        %1023 = vmatpush1.bf16.msra.mxu0 0
        %1024 = vmatprep.subr.bf16.mxu0 0
        %1025 = vmatpush1.bf16.msra.mxu0 0
        %1026 = vmatprep.subr.bf16.mxu0 0
        %1027 = vmatpush1.bf16.msra.mxu0 0
        %1028 = vmatprep.subr.bf16.mxu0 0
        %1029 = vmatpush1.bf16.msra.mxu0 0
        %1030 = vmatprep.subr.bf16.mxu0 0
        %1031 = vmatpush1.bf16.msra.mxu0 0
        %1032 = vmatprep.subr.bf16.mxu0 0
        %1033 = vmatpush1.bf16.msra.mxu0 0
        %1034 = vmatprep.subr.bf16.mxu0 0
        %1035 = vmatpush1.bf16.msra.mxu0 0
        %1036 = vmatprep.mubr.bf16.mxu0 0
        %1037 = vmatmul.mubr.bf16.gmra.mrb[0].mxu0 %v999
        %v1038 = vpop.f32.mrb[0].mxu0
        %v1039 = vadd.f32 0.0, %v1038
        %v1040 = vpop.f32.mrb[0].mxu0
        %v1041 = vadd.f32 0.0, %v1040
        %v1042 = vpop.f32.mrb[0].mxu0
        %v1043 = vadd.f32 0.0, %v1042
        %v1044 = vpop.f32.mrb[0].mxu0
        %v1045 = vadd.f32 0.0, %v1044
        %1046 = vmatprep.mubr.bf16.mxu0 0
        %1047 = vmatmul.mubr.bf16.gmra.mrb[0].mxu0 %v1002
        %v1048 = vpop.f32.mrb[0].mxu0
        %v1049 = vadd.f32 0.0, %v1048
        %v1050 = vpop.f32.mrb[0].mxu0
        %v1051 = vadd.f32 0.0, %v1050
        %v1052 = vpop.f32.mrb[0].mxu0
        %v1053 = vadd.f32 0.0, %v1052
        %v1054 = vpop.f32.mrb[0].mxu0
        %v1055 = vadd.f32 0.0, %v1054
        %1056 = vdwg.mxu0
        %1057 = vmatprep.subr.bf16.mxu0 0
        %1058 = vmatpush1.bf16.msra.mxu0 %v988
        %1059 = vmatprep.subr.bf16.mxu0 0
        %1060 = vmatpush1.bf16.msra.mxu0 %v991
        %1061 = vmatprep.subr.bf16.mxu0 0
        %1062 = vmatpush1.bf16.msra.mxu0 0
        %1063 = vmatprep.subr.bf16.mxu0 0
        %1064 = vmatpush1.bf16.msra.mxu0 0
        %1065 = vmatprep.subr.bf16.mxu0 0
        %1066 = vmatpush1.bf16.msra.mxu0 0
        %1067 = vmatprep.subr.bf16.mxu0 0
        %1068 = vmatpush1.bf16.msra.mxu0 0
        %1069 = vmatprep.subr.bf16.mxu0 0
        %1070 = vmatpush1.bf16.msra.mxu0 0
        %1071 = vmatprep.subr.bf16.mxu0 0
        %1072 = vmatpush1.bf16.msra.mxu0 0
        %1073 = vmatprep.subr.bf16.mxu0 0
        %1074 = vmatpush1.bf16.msra.mxu0 0
        %1075 = vmatprep.subr.bf16.mxu0 0
        %1076 = vmatpush1.bf16.msra.mxu0 0
        %1077 = vmatprep.subr.bf16.mxu0 0
        %1078 = vmatpush1.bf16.msra.mxu0 0
        %1079 = vmatprep.subr.bf16.mxu0 0
        %1080 = vmatpush1.bf16.msra.mxu0 0
        %1081 = vmatprep.subr.bf16.mxu0 0
        %1082 = vmatpush1.bf16.msra.mxu0 0
        %1083 = vmatprep.subr.bf16.mxu0 0
        %1084 = vmatpush1.bf16.msra.mxu0 0
        %1085 = vmatprep.subr.bf16.mxu0 0
        %1086 = vmatpush1.bf16.msra.mxu0 0
        %1087 = vmatprep.subr.bf16.mxu0 0
        %1088 = vmatpush1.bf16.msra.mxu0 0
        %1089 = vmatprep.mubr.bf16.mxu0 0
        %1090 = vmatmul.mubr.bf16.gmra.mrb[0].mxu0 %v999
        %v1091 = vpop.f32.mrb[0].mxu0
        %v1092 = vadd.f32 0.0, %v1091
        %v1093 = vpop.f32.mrb[0].mxu0
        %v1094 = vpop.f32.mrb[0].mxu0
        %v1095 = vadd.f32 0.0, %v1094
        %v1096 = vpop.f32.mrb[0].mxu0
        %1097 = vmatprep.mubr.bf16.mxu0 0
        %1098 = vmatmul.mubr.bf16.gmra.mrb[0].mxu0 %v1002
        %v1099 = vpop.f32.mrb[0].mxu0
        %v1100 = vadd.f32 0.0, %v1099
        %v1101 = vpop.f32.mrb[0].mxu0
        %v1102 = vpop.f32.mrb[0].mxu0
        %v1103 = vadd.f32 0.0, %v1102
        %v1104 = vpop.f32.mrb[0].mxu0
        %1105 = vdwg.mxu0
        %v1106 = vadd.f32 %v942, %v1039
        %v1107 = vadd.f32 %v943, %v1041
        %v1108 = vadd.f32 %v944, %v1092
        %v1109 = vadd.f32 %v945, %v1043
        %v1110 = vadd.f32 %v946, %v1045
        %v1111 = vadd.f32 %v947, %v1095
        %v1112 = vadd.f32 %v948, %v1049
        %v1113 = vadd.f32 %v949, %v1051
        %v1114 = vadd.f32 %v950, %v1100
        %v1115 = vadd.f32 %v951, %v1053
        %v1116 = vadd.f32 %v952, %v1055
        %v1117 = vadd.f32 %v953, %v1103
        %s1118 = scalar_lea.vmem [#allocation5], 80
        %v1119 = vld [vmem:[%s1118] sm:$0xf]
        %v1120 = vld [vmem:[%s1118 + $0x4] sm:$0xf]
        %v1121 = vld [vmem:[%s1118 + $0x8] sm:$0xf]
        %v1122 = vld [vmem:[%s1118 + $0xc] sm:$0xf]
        %v1127 = vunpack.c.l.b16 %v1119
        %v1128 = vunpack.c.l.b16 %v1120
        %v1129 = vunpack.c.l.b16 %v1121
        %v1130 = vunpack.c.l.b16 %v1122
        %v1131 = vpack.c.b16 %v1128, %v1127
        %v1132 = vpack.c.b16 %v1130, %v1129
        %1133 = vrot.lane.b32.xlu0 %v356, 108
        %v1134 = vpop.permute.xlu0 %1133
        %1135 = vrot.lane.b32.xlu0 %v357, 108
        %v1136 = vpop.permute.xlu0 %1135
        %1137 = vrot.lane.b32.xlu0 %v358, 108
        %v1138 = vpop.permute.xlu0 %1137
        %1139 = vrot.lane.b32.xlu0 %v359, 108
        %v1140 = vpop.permute.xlu0 %1139
        %1141 = vrot.lane.b32.xlu0 %v360, 108
        %v1142 = vpop.permute.xlu0 %1141
        %1143 = vrot.lane.b32.xlu0 %v361, 108
        %v1144 = vpop.permute.xlu0 %1143
        %1145 = vrot.lane.b32.xlu0 %v362, 108
        %v1146 = vpop.permute.xlu0 %1145
        %1147 = vrot.lane.b32.xlu0 %v363, 108
        %v1148 = vpop.permute.xlu0 %1147
        %vm1149 = vcmask 883712
        %v1150 = vsel %vm1149, %v1134, %v1136
        %v1151 = vsel %vm1149, %v1136, %v1138
        %v1152 = vsel %vm1149, %v1138, %v1140
        %v1153 = vsel %vm1149, %v1142, %v1144
        %v1154 = vsel %vm1149, %v1144, %v1146
        %v1155 = vsel %vm1149, %v1146, %v1148
        %v1163 = vsel %vm393, %v1131, 0
        %v1166 = vsel %vm393, %v1132, 0
        %1168 = vmatprep.subr.bf16.mxu0 %v1151
        %1169 = vmatpush1.bf16.msra.mxu0 %v1150
        %1170 = vmatprep.subr.bf16.mxu0 %v1154
        %1171 = vmatpush1.bf16.msra.mxu0 %v1153
        %1172 = vmatprep.subr.bf16.mxu0 0
        %1173 = vmatpush1.bf16.msra.mxu0 0
        %1174 = vmatprep.subr.bf16.mxu0 0
        %1175 = vmatpush1.bf16.msra.mxu0 0
        %1176 = vmatprep.subr.bf16.mxu0 0
        %1177 = vmatpush1.bf16.msra.mxu0 0
        %1178 = vmatprep.subr.bf16.mxu0 0
        %1179 = vmatpush1.bf16.msra.mxu0 0
        %1180 = vmatprep.subr.bf16.mxu0 0
        %1181 = vmatpush1.bf16.msra.mxu0 0
        %1182 = vmatprep.subr.bf16.mxu0 0
        %1183 = vmatpush1.bf16.msra.mxu0 0
        %1184 = vmatprep.subr.bf16.mxu0 0
        %1185 = vmatpush1.bf16.msra.mxu0 0
        %1186 = vmatprep.subr.bf16.mxu0 0
        %1187 = vmatpush1.bf16.msra.mxu0 0
        %1188 = vmatprep.subr.bf16.mxu0 0
        %1189 = vmatpush1.bf16.msra.mxu0 0
        %1190 = vmatprep.subr.bf16.mxu0 0
        %1191 = vmatpush1.bf16.msra.mxu0 0
        %1192 = vmatprep.subr.bf16.mxu0 0
        %1193 = vmatpush1.bf16.msra.mxu0 0
        %1194 = vmatprep.subr.bf16.mxu0 0
        %1195 = vmatpush1.bf16.msra.mxu0 0
        %1196 = vmatprep.subr.bf16.mxu0 0
        %1197 = vmatpush1.bf16.msra.mxu0 0
        %1198 = vmatprep.subr.bf16.mxu0 0
        %1199 = vmatpush1.bf16.msra.mxu0 0
        %1200 = vmatprep.mubr.bf16.mxu0 0
        %1201 = vmatmul.mubr.bf16.gmra.mrb[0].mxu0 %v1163
        %v1202 = vpop.f32.mrb[0].mxu0
        %v1203 = vadd.f32 0.0, %v1202
        %v1204 = vpop.f32.mrb[0].mxu0
        %v1205 = vadd.f32 0.0, %v1204
        %v1206 = vpop.f32.mrb[0].mxu0
        %v1207 = vadd.f32 0.0, %v1206
        %v1208 = vpop.f32.mrb[0].mxu0
        %v1209 = vadd.f32 0.0, %v1208
        %1210 = vmatprep.mubr.bf16.mxu0 0
        %1211 = vmatmul.mubr.bf16.gmra.mrb[0].mxu0 %v1166
        %v1212 = vpop.f32.mrb[0].mxu0
        %v1213 = vadd.f32 0.0, %v1212
        %v1214 = vpop.f32.mrb[0].mxu0
        %v1215 = vadd.f32 0.0, %v1214
        %v1216 = vpop.f32.mrb[0].mxu0
        %v1217 = vadd.f32 0.0, %v1216
        %v1218 = vpop.f32.mrb[0].mxu0
        %v1219 = vadd.f32 0.0, %v1218
        %1220 = vdwg.mxu0
        %1221 = vmatprep.subr.bf16.mxu0 0
        %1222 = vmatpush1.bf16.msra.mxu0 %v1152
        %1223 = vmatprep.subr.bf16.mxu0 0
        %1224 = vmatpush1.bf16.msra.mxu0 %v1155
        %1225 = vmatprep.subr.bf16.mxu0 0
        %1226 = vmatpush1.bf16.msra.mxu0 0
        %1227 = vmatprep.subr.bf16.mxu0 0
        %1228 = vmatpush1.bf16.msra.mxu0 0
        %1229 = vmatprep.subr.bf16.mxu0 0
        %1230 = vmatpush1.bf16.msra.mxu0 0
        %1231 = vmatprep.subr.bf16.mxu0 0
        %1232 = vmatpush1.bf16.msra.mxu0 0
        %1233 = vmatprep.subr.bf16.mxu0 0
        %1234 = vmatpush1.bf16.msra.mxu0 0
        %1235 = vmatprep.subr.bf16.mxu0 0
        %1236 = vmatpush1.bf16.msra.mxu0 0
        %1237 = vmatprep.subr.bf16.mxu0 0
        %1238 = vmatpush1.bf16.msra.mxu0 0
        %1239 = vmatprep.subr.bf16.mxu0 0
        %1240 = vmatpush1.bf16.msra.mxu0 0
        %1241 = vmatprep.subr.bf16.mxu0 0
        %1242 = vmatpush1.bf16.msra.mxu0 0
        %1243 = vmatprep.subr.bf16.mxu0 0
        %1244 = vmatpush1.bf16.msra.mxu0 0
        %1245 = vmatprep.subr.bf16.mxu0 0
        %1246 = vmatpush1.bf16.msra.mxu0 0
        %1247 = vmatprep.subr.bf16.mxu0 0
        %1248 = vmatpush1.bf16.msra.mxu0 0
        %1249 = vmatprep.subr.bf16.mxu0 0
        %1250 = vmatpush1.bf16.msra.mxu0 0
        %1251 = vmatprep.subr.bf16.mxu0 0
        %1252 = vmatpush1.bf16.msra.mxu0 0
        %1253 = vmatprep.mubr.bf16.mxu0 0
        %1254 = vmatmul.mubr.bf16.gmra.mrb[0].mxu0 %v1163
        %v1255 = vpop.f32.mrb[0].mxu0
        %v1256 = vadd.f32 0.0, %v1255
        %v1257 = vpop.f32.mrb[0].mxu0
        %v1258 = vpop.f32.mrb[0].mxu0
        %v1259 = vadd.f32 0.0, %v1258
        %v1260 = vpop.f32.mrb[0].mxu0
        %1261 = vmatprep.mubr.bf16.mxu0 0
        %1262 = vmatmul.mubr.bf16.gmra.mrb[0].mxu0 %v1166
        %v1263 = vpop.f32.mrb[0].mxu0
        %v1264 = vadd.f32 0.0, %v1263
        %v1265 = vpop.f32.mrb[0].mxu0
        %v1266 = vpop.f32.mrb[0].mxu0
        %v1267 = vadd.f32 0.0, %v1266
        %v1268 = vpop.f32.mrb[0].mxu0
        %1269 = vdwg.mxu0
        %v1270 = vadd.f32 %v1106, %v1203
        %v1271 = vadd.f32 %v1107, %v1205
        %v1272 = vadd.f32 %v1108, %v1256
        %v1273 = vadd.f32 %v1109, %v1207
        %v1274 = vadd.f32 %v1110, %v1209
        %v1275 = vadd.f32 %v1111, %v1259
        %v1276 = vadd.f32 %v1112, %v1213
        %v1277 = vadd.f32 %v1113, %v1215
        %v1278 = vadd.f32 %v1114, %v1264
        %v1279 = vadd.f32 %v1115, %v1217
        %v1280 = vadd.f32 %v1116, %v1219
        %v1281 = vadd.f32 %v1117, %v1267
        %s1282 = scalar_lea.vmem [#allocation5], 96
        %v1283 = vld [vmem:[%s1282] sm:$0xf]
        %v1284 = vld [vmem:[%s1282 + $0x4] sm:$0xf]
        %v1285 = vld [vmem:[%s1282 + $0x8] sm:$0xf]
        %v1286 = vld [vmem:[%s1282 + $0xc] sm:$0xf]
        %v1291 = vunpack.c.l.b16 %v1283
        %v1292 = vunpack.c.l.b16 %v1284
        %v1293 = vunpack.c.l.b16 %v1285
        %v1294 = vunpack.c.l.b16 %v1286
        %v1295 = vpack.c.b16 %v1292, %v1291
        %v1296 = vpack.c.b16 %v1294, %v1293
        %1297 = vrot.lane.b32.xlu0 %v356, 92
        %v1298 = vpop.permute.xlu0 %1297
        %1299 = vrot.lane.b32.xlu0 %v357, 92
        %v1300 = vpop.permute.xlu0 %1299
        %1301 = vrot.lane.b32.xlu0 %v358, 92
        %v1302 = vpop.permute.xlu0 %1301
        %1303 = vrot.lane.b32.xlu0 %v359, 92
        %v1304 = vpop.permute.xlu0 %1303
        %1305 = vrot.lane.b32.xlu0 %v360, 92
        %v1306 = vpop.permute.xlu0 %1305
        %1307 = vrot.lane.b32.xlu0 %v361, 92
        %v1308 = vpop.permute.xlu0 %1307
        %1309 = vrot.lane.b32.xlu0 %v362, 92
        %v1310 = vpop.permute.xlu0 %1309
        %1311 = vrot.lane.b32.xlu0 %v363, 92
        %v1312 = vpop.permute.xlu0 %1311
        %vm1313 = vcmask 752640
        %v1314 = vsel %vm1313, %v1298, %v1300
        %v1315 = vsel %vm1313, %v1300, %v1302
        %v1316 = vsel %vm1313, %v1302, %v1304
        %v1317 = vsel %vm1313, %v1306, %v1308
        %v1318 = vsel %vm1313, %v1308, %v1310
        %v1319 = vsel %vm1313, %v1310, %v1312
        %v1327 = vsel %vm393, %v1295, 0
        %v1330 = vsel %vm393, %v1296, 0
        %1332 = vmatprep.subr.bf16.mxu0 %v1315
        %1333 = vmatpush1.bf16.msra.mxu0 %v1314
        %1334 = vmatprep.subr.bf16.mxu0 %v1318
        %1335 = vmatpush1.bf16.msra.mxu0 %v1317
        %1336 = vmatprep.subr.bf16.mxu0 0
        %1337 = vmatpush1.bf16.msra.mxu0 0
        %1338 = vmatprep.subr.bf16.mxu0 0
        %1339 = vmatpush1.bf16.msra.mxu0 0
        %1340 = vmatprep.subr.bf16.mxu0 0
        %1341 = vmatpush1.bf16.msra.mxu0 0
        %1342 = vmatprep.subr.bf16.mxu0 0
        %1343 = vmatpush1.bf16.msra.mxu0 0
        %1344 = vmatprep.subr.bf16.mxu0 0
        %1345 = vmatpush1.bf16.msra.mxu0 0
        %1346 = vmatprep.subr.bf16.mxu0 0
        %1347 = vmatpush1.bf16.msra.mxu0 0
        %1348 = vmatprep.subr.bf16.mxu0 0
        %1349 = vmatpush1.bf16.msra.mxu0 0
        %1350 = vmatprep.subr.bf16.mxu0 0
        %1351 = vmatpush1.bf16.msra.mxu0 0
        %1352 = vmatprep.subr.bf16.mxu0 0
        %1353 = vmatpush1.bf16.msra.mxu0 0
        %1354 = vmatprep.subr.bf16.mxu0 0
        %1355 = vmatpush1.bf16.msra.mxu0 0
        %1356 = vmatprep.subr.bf16.mxu0 0
        %1357 = vmatpush1.bf16.msra.mxu0 0
        %1358 = vmatprep.subr.bf16.mxu0 0
        %1359 = vmatpush1.bf16.msra.mxu0 0
        %1360 = vmatprep.subr.bf16.mxu0 0
        %1361 = vmatpush1.bf16.msra.mxu0 0
        %1362 = vmatprep.subr.bf16.mxu0 0
        %1363 = vmatpush1.bf16.msra.mxu0 0
        %1364 = vmatprep.mubr.bf16.mxu0 0
        %1365 = vmatmul.mubr.bf16.gmra.mrb[0].mxu0 %v1327
        %v1366 = vpop.f32.mrb[0].mxu0
        %v1367 = vadd.f32 0.0, %v1366
        %v1368 = vpop.f32.mrb[0].mxu0
        %v1369 = vadd.f32 0.0, %v1368
        %v1370 = vpop.f32.mrb[0].mxu0
        %v1371 = vadd.f32 0.0, %v1370
        %v1372 = vpop.f32.mrb[0].mxu0
        %v1373 = vadd.f32 0.0, %v1372
        %1374 = vmatprep.mubr.bf16.mxu0 0
        %1375 = vmatmul.mubr.bf16.gmra.mrb[0].mxu0 %v1330
        %v1376 = vpop.f32.mrb[0].mxu0
        %v1377 = vadd.f32 0.0, %v1376
        %v1378 = vpop.f32.mrb[0].mxu0
        %v1379 = vadd.f32 0.0, %v1378
        %v1380 = vpop.f32.mrb[0].mxu0
        %v1381 = vadd.f32 0.0, %v1380
        %v1382 = vpop.f32.mrb[0].mxu0
        %v1383 = vadd.f32 0.0, %v1382
        %1384 = vdwg.mxu0
        %1385 = vmatprep.subr.bf16.mxu0 0
        %1386 = vmatpush1.bf16.msra.mxu0 %v1316
        %1387 = vmatprep.subr.bf16.mxu0 0
        %1388 = vmatpush1.bf16.msra.mxu0 %v1319
        %1389 = vmatprep.subr.bf16.mxu0 0
        %1390 = vmatpush1.bf16.msra.mxu0 0
        %1391 = vmatprep.subr.bf16.mxu0 0
        %1392 = vmatpush1.bf16.msra.mxu0 0
        %1393 = vmatprep.subr.bf16.mxu0 0
        %1394 = vmatpush1.bf16.msra.mxu0 0
        %1395 = vmatprep.subr.bf16.mxu0 0
        %1396 = vmatpush1.bf16.msra.mxu0 0
        %1397 = vmatprep.subr.bf16.mxu0 0
        %1398 = vmatpush1.bf16.msra.mxu0 0
        %1399 = vmatprep.subr.bf16.mxu0 0
        %1400 = vmatpush1.bf16.msra.mxu0 0
        %1401 = vmatprep.subr.bf16.mxu0 0
        %1402 = vmatpush1.bf16.msra.mxu0 0
        %1403 = vmatprep.subr.bf16.mxu0 0
        %1404 = vmatpush1.bf16.msra.mxu0 0
        %1405 = vmatprep.subr.bf16.mxu0 0
        %1406 = vmatpush1.bf16.msra.mxu0 0
        %1407 = vmatprep.subr.bf16.mxu0 0
        %1408 = vmatpush1.bf16.msra.mxu0 0
        %1409 = vmatprep.subr.bf16.mxu0 0
        %1410 = vmatpush1.bf16.msra.mxu0 0
        %1411 = vmatprep.subr.bf16.mxu0 0
        %1412 = vmatpush1.bf16.msra.mxu0 0
        %1413 = vmatprep.subr.bf16.mxu0 0
        %1414 = vmatpush1.bf16.msra.mxu0 0
        %1415 = vmatprep.subr.bf16.mxu0 0
        %1416 = vmatpush1.bf16.msra.mxu0 0
        %1417 = vmatprep.mubr.bf16.mxu0 0
        %1418 = vmatmul.mubr.bf16.gmra.mrb[0].mxu0 %v1327
        %v1419 = vpop.f32.mrb[0].mxu0
        %v1420 = vadd.f32 0.0, %v1419
        %v1421 = vpop.f32.mrb[0].mxu0
        %v1422 = vpop.f32.mrb[0].mxu0
        %v1423 = vadd.f32 0.0, %v1422
        %v1424 = vpop.f32.mrb[0].mxu0
        %1425 = vmatprep.mubr.bf16.mxu0 0
        %1426 = vmatmul.mubr.bf16.gmra.mrb[0].mxu0 %v1330
        %v1427 = vpop.f32.mrb[0].mxu0
        %v1428 = vadd.f32 0.0, %v1427
        %v1429 = vpop.f32.mrb[0].mxu0
        %v1430 = vpop.f32.mrb[0].mxu0
        %v1431 = vadd.f32 0.0, %v1430
        %v1432 = vpop.f32.mrb[0].mxu0
        %1433 = vdwg.mxu0
        %v1434 = vadd.f32 %v1270, %v1367
        %v1435 = vadd.f32 %v1271, %v1369
        %v1436 = vadd.f32 %v1272, %v1420
        %v1437 = vadd.f32 %v1273, %v1371
        %v1438 = vadd.f32 %v1274, %v1373
        %v1439 = vadd.f32 %v1275, %v1423
        %v1440 = vadd.f32 %v1276, %v1377
        %v1441 = vadd.f32 %v1277, %v1379
        %v1442 = vadd.f32 %v1278, %v1428
        %v1443 = vadd.f32 %v1279, %v1381
        %v1444 = vadd.f32 %v1280, %v1383
        %v1445 = vadd.f32 %v1281, %v1431
        %s1446 = scalar_lea.vmem [#allocation5], 112
        %v1447 = vld [vmem:[%s1446] sm:$0xf]
        %v1448 = vld [vmem:[%s1446 + $0x4] sm:$0xf]
        %v1449 = vld [vmem:[%s1446 + $0x8] sm:$0xf]
        %v1450 = vld [vmem:[%s1446 + $0xc] sm:$0xf]
        %v1455 = vunpack.c.l.b16 %v1447
        %v1456 = vunpack.c.l.b16 %v1448
        %v1457 = vunpack.c.l.b16 %v1449
        %v1458 = vunpack.c.l.b16 %v1450
        %v1459 = vpack.c.b16 %v1456, %v1455
        %v1460 = vpack.c.b16 %v1458, %v1457
        %1461 = vrot.lane.b32.xlu0 %v356, 91
        %v1462 = vpop.permute.xlu0 %1461
        %1463 = vrot.lane.b32.xlu0 %v357, 91
        %v1464 = vpop.permute.xlu0 %1463
        %1465 = vrot.lane.b32.xlu0 %v358, 91
        %v1466 = vpop.permute.xlu0 %1465
        %1467 = vrot.lane.b32.xlu0 %v359, 91
        %v1468 = vpop.permute.xlu0 %1467
        %1469 = vrot.lane.b32.xlu0 %v360, 91
        %v1470 = vpop.permute.xlu0 %1469
        %1471 = vrot.lane.b32.xlu0 %v361, 91
        %v1472 = vpop.permute.xlu0 %1471
        %1473 = vrot.lane.b32.xlu0 %v362, 91
        %v1474 = vpop.permute.xlu0 %1473
        %1475 = vrot.lane.b32.xlu0 %v363, 91
        %v1476 = vpop.permute.xlu0 %1475
        %vm1477 = vcmask 744448
        %v1478 = vsel %vm1477, %v1462, %v1464
        %v1479 = vsel %vm1477, %v1464, %v1466
        %v1480 = vsel %vm1477, %v1466, %v1468
        %v1481 = vsel %vm1477, %v1470, %v1472
        %v1482 = vsel %vm1477, %v1472, %v1474
        %v1483 = vsel %vm1477, %v1474, %v1476
        %v1491 = vsel %vm393, %v1459, 0
        %v1494 = vsel %vm393, %v1460, 0
        %1496 = vmatprep.subr.bf16.mxu0 %v1479
        %1497 = vmatpush1.bf16.msra.mxu0 %v1478
        %1498 = vmatprep.subr.bf16.mxu0 %v1482
        %1499 = vmatpush1.bf16.msra.mxu0 %v1481
        %1500 = vmatprep.subr.bf16.mxu0 0
        %1501 = vmatpush1.bf16.msra.mxu0 0
        %1502 = vmatprep.subr.bf16.mxu0 0
        %1503 = vmatpush1.bf16.msra.mxu0 0
        %1504 = vmatprep.subr.bf16.mxu0 0
        %1505 = vmatpush1.bf16.msra.mxu0 0
        %1506 = vmatprep.subr.bf16.mxu0 0
        %1507 = vmatpush1.bf16.msra.mxu0 0
        %1508 = vmatprep.subr.bf16.mxu0 0
        %1509 = vmatpush1.bf16.msra.mxu0 0
        %1510 = vmatprep.subr.bf16.mxu0 0
        %1511 = vmatpush1.bf16.msra.mxu0 0
        %1512 = vmatprep.subr.bf16.mxu0 0
        %1513 = vmatpush1.bf16.msra.mxu0 0
        %1514 = vmatprep.subr.bf16.mxu0 0
        %1515 = vmatpush1.bf16.msra.mxu0 0
        %1516 = vmatprep.subr.bf16.mxu0 0
        %1517 = vmatpush1.bf16.msra.mxu0 0
        %1518 = vmatprep.subr.bf16.mxu0 0
        %1519 = vmatpush1.bf16.msra.mxu0 0
        %1520 = vmatprep.subr.bf16.mxu0 0
        %1521 = vmatpush1.bf16.msra.mxu0 0
        %1522 = vmatprep.subr.bf16.mxu0 0
        %1523 = vmatpush1.bf16.msra.mxu0 0
        %1524 = vmatprep.subr.bf16.mxu0 0
        %1525 = vmatpush1.bf16.msra.mxu0 0
        %1526 = vmatprep.subr.bf16.mxu0 0
        %1527 = vmatpush1.bf16.msra.mxu0 0
        %1528 = vmatprep.mubr.bf16.mxu0 0
        %1529 = vmatmul.mubr.bf16.gmra.mrb[0].mxu0 %v1491
        %v1530 = vpop.f32.mrb[0].mxu0
        %v1531 = vadd.f32 0.0, %v1530
        %v1532 = vpop.f32.mrb[0].mxu0
        %v1533 = vadd.f32 0.0, %v1532
        %v1534 = vpop.f32.mrb[0].mxu0
        %v1535 = vadd.f32 0.0, %v1534
        %v1536 = vpop.f32.mrb[0].mxu0
        %v1537 = vadd.f32 0.0, %v1536
        %1538 = vmatprep.mubr.bf16.mxu0 0
        %1539 = vmatmul.mubr.bf16.gmra.mrb[0].mxu0 %v1494
        %v1540 = vpop.f32.mrb[0].mxu0
        %v1541 = vadd.f32 0.0, %v1540
        %v1542 = vpop.f32.mrb[0].mxu0
        %v1543 = vadd.f32 0.0, %v1542
        %v1544 = vpop.f32.mrb[0].mxu0
        %v1545 = vadd.f32 0.0, %v1544
        %v1546 = vpop.f32.mrb[0].mxu0
        %v1547 = vadd.f32 0.0, %v1546
        %1548 = vdwg.mxu0
        %1549 = vmatprep.subr.bf16.mxu0 0
        %1550 = vmatpush1.bf16.msra.mxu0 %v1480
        %1551 = vmatprep.subr.bf16.mxu0 0
        %1552 = vmatpush1.bf16.msra.mxu0 %v1483
        %1553 = vmatprep.subr.bf16.mxu0 0
        %1554 = vmatpush1.bf16.msra.mxu0 0
        %1555 = vmatprep.subr.bf16.mxu0 0
        %1556 = vmatpush1.bf16.msra.mxu0 0
        %1557 = vmatprep.subr.bf16.mxu0 0
        %1558 = vmatpush1.bf16.msra.mxu0 0
        %1559 = vmatprep.subr.bf16.mxu0 0
        %1560 = vmatpush1.bf16.msra.mxu0 0
        %1561 = vmatprep.subr.bf16.mxu0 0
        %1562 = vmatpush1.bf16.msra.mxu0 0
        %1563 = vmatprep.subr.bf16.mxu0 0
        %1564 = vmatpush1.bf16.msra.mxu0 0
        %1565 = vmatprep.subr.bf16.mxu0 0
        %1566 = vmatpush1.bf16.msra.mxu0 0
        %1567 = vmatprep.subr.bf16.mxu0 0
        %1568 = vmatpush1.bf16.msra.mxu0 0
        %1569 = vmatprep.subr.bf16.mxu0 0
        %1570 = vmatpush1.bf16.msra.mxu0 0
        %1571 = vmatprep.subr.bf16.mxu0 0
        %1572 = vmatpush1.bf16.msra.mxu0 0
        %1573 = vmatprep.subr.bf16.mxu0 0
        %1574 = vmatpush1.bf16.msra.mxu0 0
        %1575 = vmatprep.subr.bf16.mxu0 0
        %1576 = vmatpush1.bf16.msra.mxu0 0
        %1577 = vmatprep.subr.bf16.mxu0 0
        %1578 = vmatpush1.bf16.msra.mxu0 0
        %1579 = vmatprep.subr.bf16.mxu0 0
        %1580 = vmatpush1.bf16.msra.mxu0 0
        %1581 = vmatprep.mubr.bf16.mxu0 0
        %1582 = vmatmul.mubr.bf16.gmra.mrb[0].mxu0 %v1491
        %v1583 = vpop.f32.mrb[0].mxu0
        %v1584 = vadd.f32 0.0, %v1583
        %v1585 = vpop.f32.mrb[0].mxu0
        %v1586 = vpop.f32.mrb[0].mxu0
        %v1587 = vadd.f32 0.0, %v1586
        %v1588 = vpop.f32.mrb[0].mxu0
        %1589 = vmatprep.mubr.bf16.mxu0 0
        %1590 = vmatmul.mubr.bf16.gmra.mrb[0].mxu0 %v1494
        %v1591 = vpop.f32.mrb[0].mxu0
        %v1592 = vadd.f32 0.0, %v1591
        %v1593 = vpop.f32.mrb[0].mxu0
        %v1594 = vpop.f32.mrb[0].mxu0
        %v1595 = vadd.f32 0.0, %v1594
        %v1596 = vpop.f32.mrb[0].mxu0
        %1597 = vdwg.mxu0
        %v1598 = vadd.f32 %v1434, %v1531
        %v1599 = vadd.f32 %v1435, %v1533
        %v1600 = vadd.f32 %v1436, %v1584
        %v1601 = vadd.f32 %v1437, %v1535
        %v1602 = vadd.f32 %v1438, %v1537
        %v1603 = vadd.f32 %v1439, %v1587
        %v1604 = vadd.f32 %v1440, %v1541
        %v1605 = vadd.f32 %v1441, %v1543
        %v1606 = vadd.f32 %v1442, %v1592
        %v1607 = vadd.f32 %v1443, %v1545
        %v1608 = vadd.f32 %v1444, %v1547
        %v1609 = vadd.f32 %v1445, %v1595
        %s1610 = scalar_lea.vmem [#allocation5], 128
        %v1611 = vld [vmem:[%s1610] sm:$0xf]
        %v1612 = vld [vmem:[%s1610 + $0x4] sm:$0xf]
        %v1613 = vld [vmem:[%s1610 + $0x8] sm:$0xf]
        %v1614 = vld [vmem:[%s1610 + $0xc] sm:$0xf]
        %v1619 = vunpack.c.l.b16 %v1611
        %v1620 = vunpack.c.l.b16 %v1612
        %v1621 = vunpack.c.l.b16 %v1613
        %v1622 = vunpack.c.l.b16 %v1614
        %v1623 = vpack.c.b16 %v1620, %v1619
        %v1624 = vpack.c.b16 %v1622, %v1621
        %1625 = vrot.lane.b32.xlu0 %v356, 90
        %v1626 = vpop.permute.xlu0 %1625
        %1627 = vrot.lane.b32.xlu0 %v357, 90
        %v1628 = vpop.permute.xlu0 %1627
        %1629 = vrot.lane.b32.xlu0 %v358, 90
        %v1630 = vpop.permute.xlu0 %1629
        %1631 = vrot.lane.b32.xlu0 %v359, 90
        %v1632 = vpop.permute.xlu0 %1631
        %1633 = vrot.lane.b32.xlu0 %v360, 90
        %v1634 = vpop.permute.xlu0 %1633
        %1635 = vrot.lane.b32.xlu0 %v361, 90
        %v1636 = vpop.permute.xlu0 %1635
        %1637 = vrot.lane.b32.xlu0 %v362, 90
        %v1638 = vpop.permute.xlu0 %1637
        %1639 = vrot.lane.b32.xlu0 %v363, 90
        %v1640 = vpop.permute.xlu0 %1639
        %vm1641 = vcmask 736256
        %v1642 = vsel %vm1641, %v1626, %v1628
        %v1643 = vsel %vm1641, %v1628, %v1630
        %v1644 = vsel %vm1641, %v1630, %v1632
        %v1645 = vsel %vm1641, %v1634, %v1636
        %v1646 = vsel %vm1641, %v1636, %v1638
        %v1647 = vsel %vm1641, %v1638, %v1640
        %v1655 = vsel %vm393, %v1623, 0
        %v1658 = vsel %vm393, %v1624, 0
        %1660 = vmatprep.subr.bf16.mxu0 %v1643
        %1661 = vmatpush1.bf16.msra.mxu0 %v1642
        %1662 = vmatprep.subr.bf16.mxu0 %v1646
        %1663 = vmatpush1.bf16.msra.mxu0 %v1645
        %1664 = vmatprep.subr.bf16.mxu0 0
        %1665 = vmatpush1.bf16.msra.mxu0 0
        %1666 = vmatprep.subr.bf16.mxu0 0
        %1667 = vmatpush1.bf16.msra.mxu0 0
        %1668 = vmatprep.subr.bf16.mxu0 0
        %1669 = vmatpush1.bf16.msra.mxu0 0
        %1670 = vmatprep.subr.bf16.mxu0 0
        %1671 = vmatpush1.bf16.msra.mxu0 0
        %1672 = vmatprep.subr.bf16.mxu0 0
        %1673 = vmatpush1.bf16.msra.mxu0 0
        %1674 = vmatprep.subr.bf16.mxu0 0
        %1675 = vmatpush1.bf16.msra.mxu0 0
        %1676 = vmatprep.subr.bf16.mxu0 0
        %1677 = vmatpush1.bf16.msra.mxu0 0
        %1678 = vmatprep.subr.bf16.mxu0 0
        %1679 = vmatpush1.bf16.msra.mxu0 0
        %1680 = vmatprep.subr.bf16.mxu0 0
        %1681 = vmatpush1.bf16.msra.mxu0 0
        %1682 = vmatprep.subr.bf16.mxu0 0
        %1683 = vmatpush1.bf16.msra.mxu0 0
        %1684 = vmatprep.subr.bf16.mxu0 0
        %1685 = vmatpush1.bf16.msra.mxu0 0
        %1686 = vmatprep.subr.bf16.mxu0 0
        %1687 = vmatpush1.bf16.msra.mxu0 0
        %1688 = vmatprep.subr.bf16.mxu0 0
        %1689 = vmatpush1.bf16.msra.mxu0 0
        %1690 = vmatprep.subr.bf16.mxu0 0
        %1691 = vmatpush1.bf16.msra.mxu0 0
        %1692 = vmatprep.mubr.bf16.mxu0 0
        %1693 = vmatmul.mubr.bf16.gmra.mrb[0].mxu0 %v1655
        %v1694 = vpop.f32.mrb[0].mxu0
        %v1695 = vadd.f32 0.0, %v1694
        %v1696 = vpop.f32.mrb[0].mxu0
        %v1697 = vadd.f32 0.0, %v1696
        %v1698 = vpop.f32.mrb[0].mxu0
        %v1699 = vadd.f32 0.0, %v1698
        %v1700 = vpop.f32.mrb[0].mxu0
        %v1701 = vadd.f32 0.0, %v1700
        %1702 = vmatprep.mubr.bf16.mxu0 0
        %1703 = vmatmul.mubr.bf16.gmra.mrb[0].mxu0 %v1658
        %v1704 = vpop.f32.mrb[0].mxu0
        %v1705 = vadd.f32 0.0, %v1704
        %v1706 = vpop.f32.mrb[0].mxu0
        %v1707 = vadd.f32 0.0, %v1706
        %v1708 = vpop.f32.mrb[0].mxu0
        %v1709 = vadd.f32 0.0, %v1708
        %v1710 = vpop.f32.mrb[0].mxu0
        %v1711 = vadd.f32 0.0, %v1710
        %1712 = vdwg.mxu0
        %1713 = vmatprep.subr.bf16.mxu0 0
        %1714 = vmatpush1.bf16.msra.mxu0 %v1644
        %1715 = vmatprep.subr.bf16.mxu0 0
        %1716 = vmatpush1.bf16.msra.mxu0 %v1647
        %1717 = vmatprep.subr.bf16.mxu0 0
        %1718 = vmatpush1.bf16.msra.mxu0 0
        %1719 = vmatprep.subr.bf16.mxu0 0
        %1720 = vmatpush1.bf16.msra.mxu0 0
        %1721 = vmatprep.subr.bf16.mxu0 0
        %1722 = vmatpush1.bf16.msra.mxu0 0
        %1723 = vmatprep.subr.bf16.mxu0 0
        %1724 = vmatpush1.bf16.msra.mxu0 0
        %1725 = vmatprep.subr.bf16.mxu0 0
        %1726 = vmatpush1.bf16.msra.mxu0 0
        %1727 = vmatprep.subr.bf16.mxu0 0
        %1728 = vmatpush1.bf16.msra.mxu0 0
        %1729 = vmatprep.subr.bf16.mxu0 0
        %1730 = vmatpush1.bf16.msra.mxu0 0
        %1731 = vmatprep.subr.bf16.mxu0 0
        %1732 = vmatpush1.bf16.msra.mxu0 0
        %1733 = vmatprep.subr.bf16.mxu0 0
        %1734 = vmatpush1.bf16.msra.mxu0 0
        %1735 = vmatprep.subr.bf16.mxu0 0
        %1736 = vmatpush1.bf16.msra.mxu0 0
        %1737 = vmatprep.subr.bf16.mxu0 0
        %1738 = vmatpush1.bf16.msra.mxu0 0
        %1739 = vmatprep.subr.bf16.mxu0 0
        %1740 = vmatpush1.bf16.msra.mxu0 0
        %1741 = vmatprep.subr.bf16.mxu0 0
        %1742 = vmatpush1.bf16.msra.mxu0 0
        %1743 = vmatprep.subr.bf16.mxu0 0
        %1744 = vmatpush1.bf16.msra.mxu0 0
        %1745 = vmatprep.mubr.bf16.mxu0 0
        %1746 = vmatmul.mubr.bf16.gmra.mrb[0].mxu0 %v1655
        %v1747 = vpop.f32.mrb[0].mxu0
        %v1748 = vadd.f32 0.0, %v1747
        %v1749 = vpop.f32.mrb[0].mxu0
        %v1750 = vpop.f32.mrb[0].mxu0
        %v1751 = vadd.f32 0.0, %v1750
        %v1752 = vpop.f32.mrb[0].mxu0
        %1753 = vmatprep.mubr.bf16.mxu0 0
        %1754 = vmatmul.mubr.bf16.gmra.mrb[0].mxu0 %v1658
        %v1755 = vpop.f32.mrb[0].mxu0
        %v1756 = vadd.f32 0.0, %v1755
        %v1757 = vpop.f32.mrb[0].mxu0
        %v1758 = vpop.f32.mrb[0].mxu0
        %v1759 = vadd.f32 0.0, %v1758
        %v1760 = vpop.f32.mrb[0].mxu0
        %1761 = vdwg.mxu0
        %v1762 = vadd.f32 %v1598, %v1695
        %v1763 = vadd.f32 %v1599, %v1697
        %v1764 = vadd.f32 %v1600, %v1748
        %v1765 = vadd.f32 %v1601, %v1699
        %v1766 = vadd.f32 %v1602, %v1701
        %v1767 = vadd.f32 %v1603, %v1751
        %v1768 = vadd.f32 %v1604, %v1705
        %v1769 = vadd.f32 %v1605, %v1707
        %v1770 = vadd.f32 %v1606, %v1756
        %v1771 = vadd.f32 %v1607, %v1709
        %v1772 = vadd.f32 %v1608, %v1711
        %v1773 = vadd.f32 %v1609, %v1759
        %v1774 = vld [vmem:[%s2] sm:$0xff]
        %v1775 = vld [vmem:[%s2 + $0x8] sm:$0xff]
        %v1776 = vld [vmem:[%s2 + $0x10] sm:$0xff]
        %v1777 = vld [vmem:[%s2 + $0x18] sm:$0xff]
        %1779 = vset.pattern.permute.xlu0 0
        %1780 = vperm.xlu0 %1779, %v1774
        %v1781 = vpop.permute.xlu0 %1780
        %1784 = vset.pattern.permute.xlu0 0
        %1785 = vperm.xlu0 %1784, %v1775
        %v1786 = vpop.permute.xlu0 %1785
        %1789 = vset.pattern.permute.xlu0 0
        %1790 = vperm.xlu0 %1789, %v1776
        %v1791 = vpop.permute.xlu0 %1790
        %1794 = vset.pattern.permute.xlu0 0
        %1795 = vperm.xlu0 %1794, %v1777
        %v1796 = vpop.permute.xlu0 %1795
        %v1798 = vadd.f32 %v1762, %v1781
        %v1799 = vadd.f32 %v1763, %v1781
        %v1800 = vadd.f32 %v1764, %v1781
        %v1801 = vadd.f32 %v1765, %v1786
        %v1802 = vadd.f32 %v1766, %v1786
        %v1803 = vadd.f32 %v1767, %v1786
        %v1804 = vadd.f32 %v1768, %v1791
        %v1805 = vadd.f32 %v1769, %v1791
        %v1806 = vadd.f32 %v1770, %v1791
        %v1807 = vadd.f32 %v1771, %v1796
        %v1808 = vadd.f32 %v1772, %v1796
        %v1809 = vadd.f32 %v1773, %v1796
        %v1810 = vxor.u32 %v1798, 2147483648
        %v1811 = vxor.u32 %v1799, 2147483648
        %v1812 = vxor.u32 %v1800, 2147483648
        %v1813 = vmul.f32 %v1810, 1.442695
        %v1814 = vpow.pop %v1813
        %v1815 = vmul.f32 %v1811, 1.442695
        %v1816 = vpow.pop %v1815
        %v1817 = vmul.f32 %v1812, 1.442695
        %v1818 = vpow.pop %v1817
        %v1819 = vadd.f32 %v1814, 1.0
        %v1820 = vadd.f32 %v1816, 1.0
        %v1821 = vadd.f32 %v1818, 1.0
        %v1822 = vrcp.pop %v1819
        %v1823 = vmul.f32 1.0, %v1822
        %v1824 = vrcp.pop %v1820
        %v1825 = vmul.f32 1.0, %v1824
        %v1826 = vrcp.pop %v1821
        %v1827 = vmul.f32 1.0, %v1826
        %v1828 = vxor.u32 %v1801, 2147483648
        %v1829 = vxor.u32 %v1802, 2147483648
        %v1830 = vxor.u32 %v1803, 2147483648
        %v1831 = vmul.f32 %v1828, 1.442695
        %v1832 = vpow.pop %v1831
        %v1833 = vmul.f32 %v1829, 1.442695
        %v1834 = vpow.pop %v1833
        %v1835 = vmul.f32 %v1830, 1.442695
        %v1836 = vpow.pop %v1835
        %v1837 = vadd.f32 %v1832, 1.0
        %v1838 = vadd.f32 %v1834, 1.0
        %v1839 = vadd.f32 %v1836, 1.0
        %v1840 = vrcp.pop %v1837
        %v1841 = vmul.f32 1.0, %v1840
        %v1842 = vrcp.pop %v1838
        %v1843 = vmul.f32 1.0, %v1842
        %v1844 = vrcp.pop %v1839
        %v1845 = vmul.f32 1.0, %v1844
        %v1846 = vtanh.pop %v1804
        %v1847 = vtanh.pop %v1805
        %v1848 = vtanh.pop %v1806
        %v1849 = vxor.u32 %v1807, 2147483648
        %v1850 = vxor.u32 %v1808, 2147483648
        %v1851 = vxor.u32 %v1809, 2147483648
        %v1852 = vmul.f32 %v1849, 1.442695
        %v1853 = vpow.pop %v1852
        %v1854 = vmul.f32 %v1850, 1.442695
        %v1855 = vpow.pop %v1854
        %v1856 = vmul.f32 %v1851, 1.442695
        %v1857 = vpow.pop %v1856
        %v1858 = vadd.f32 %v1853, 1.0
        %v1859 = vadd.f32 %v1855, 1.0
        %v1860 = vadd.f32 %v1857, 1.0
        %v1861 = vrcp.pop %v1858
        %v1862 = vmul.f32 1.0, %v1861
        %v1863 = vrcp.pop %v1859
        %v1864 = vmul.f32 1.0, %v1863
        %v1865 = vrcp.pop %v1860
        %v1866 = vmul.f32 1.0, %v1865
        %v1867 = vld [vmem:[%s267] sm:$0xff]
        %v1868 = vld [vmem:[%s267 + $0x8] sm:$0xff]
        %v1869 = vld [vmem:[%s267 + $0x10] sm:$0xff]
        %v1870 = vmul.f32 %v1841, %v1867
        %v1871 = vmul.f32 %v1843, %v1868
        %v1872 = vmul.f32 %v1845, %v1869
        %v1873 = vmul.f32 %v1823, %v1846
        %v1874 = vmul.f32 %v1825, %v1847
        %v1875 = vmul.f32 %v1827, %v1848
        %v1876 = vadd.f32 %v1870, %v1873
        %v1877 = vadd.f32 %v1871, %v1874
        %v1878 = vadd.f32 %v1872, %v1875
        %v1879 = vtanh.pop %v1876
        %v1880 = vtanh.pop %v1877
        %v1881 = vtanh.pop %v1878
        %v1882 = vmul.f32 %v1862, %v1879
        %v1883 = vmul.f32 %v1864, %v1880
        %v1884 = vmul.f32 %v1866, %v1881
        %1885 = vst [vmem:[%s296] sm:$0xff] %v1882
        %1886 = vst [vmem:[%s296 + $0x8] sm:$0xff] %v1883
        %1887 = vst [vmem:[%s296 + $0x10] sm:$0xff] %v1884
        %1888 = vst [vmem:[%s303] sm:$0xff] %v1876
        %1889 = vst [vmem:[%s303 + $0x8] sm:$0xff] %v1877
        %1890 = vst [vmem:[%s303 + $0x10] sm:$0xff] %v1878
        %s1891 = sand.u32 %s129, 1
        %s1892 = scalar_lea.sflag [#allocation4], %s1891
        %s1893 = sand.u32 %s129, 1
        %s1894 = smul.addr %s1893, 24
        %s1895 = scalar_lea.vmem [#allocation8], %s1894
        %s1896 = sand.u32 %s155, 1
        %s1897 = scalar_lea.sflag [#allocation10], %s1896
        %s1898 = sand.u32 %s155, 1
        %s1899 = smul.addr %s1898, 24
        %s1900 = scalar_lea.vmem [#allocation9], %s1899
        // Predicated region
        $region49: #{tpu_custom_call.1} parent=35 // pred_check
          %p1901 = pneg %p139
        $region50: #{tpu_custom_call.1} parent=35 // pred_check_branch
          %1903 = sbr.rel (%p1901) target = $region52
        $region51: #{tpu_custom_call.1} parent=35 // pred_region
          %s1905 = ssub.s32 384, 384
          %1906 = vsyncadd %s1892, %s1905
          %s1907 = smul.addr %s27, 3
          %s1908 = smul.addr %s1907, 128
          %s1909 = scalar_lea.hbm %s4, %s1908
          %s1911 = sshll.u32 %s1895, 4
          %s1912 = int_to_ptr.vmem [resolvable:$true] %s1911
          %1914 = dma.vmem_to_hbm [thread:$0]  %s1912, 384, %s1909, %s1892
        $region52: #{tpu_custom_call.1} parent=35 // pred_fallthru
          _
        // Predicated region
        $region53: #{tpu_custom_call.1} parent=35 // pred_check
          %p1915 = pneg %p165
        $region54: #{tpu_custom_call.1} parent=35 // pred_check_branch
          %1917 = sbr.rel (%p1915) target = $region56
        $region55: #{tpu_custom_call.1} parent=35 // pred_region
          %s1919 = ssub.s32 384, 384
          %1920 = vsyncadd %s1897, %s1919
          %s1921 = smul.addr %s27, 3
          %s1922 = smul.addr %s1921, 128
          %s1923 = scalar_lea.hbm %s5, %s1922
          %s1925 = sshll.u32 %s1900, 4
          %s1926 = int_to_ptr.vmem [resolvable:$true] %s1925
          %1928 = dma.vmem_to_hbm [thread:$0]  %s1926, 384, %s1923, %s1897
        $region56: #{tpu_custom_call.1} parent=35 // pred_fallthru
          _
      $region36: #{tpu_custom_call.1} parent=5 // pred_fallthru
        _
      %p1929 = scmp.le.s32.totalorder 2, %s22
      // Predicated region
      $region57: #{tpu_custom_call.1} parent=5 // pred_check
        %p1930 = pneg %p1929
      $region58: #{tpu_custom_call.1} parent=5 // pred_check_branch
        %1932 = sbr.rel (%p1930) target = $region60
      $region59: #{tpu_custom_call.1} parent=5 // pred_region
        %s1933 = ssub.s32 %s22, 2
        // Predicated region
        $region61: #{tpu_custom_call.1} parent=59 // pred_check
          %p1934 = pneg %p145
        $region62: #{tpu_custom_call.1} parent=59 // pred_check_branch
          %1936 = sbr.rel (%p1934) target = $region64
        $region63: #{tpu_custom_call.1} parent=59 // pred_region
          %s1937 = sand.u32 %s130, 1
          %s1938 = scalar_lea.sflag [#allocation4], %s1937
          %s1939 = sand.u32 %s130, 1
          %s1940 = smul.addr %s1939, 24
          %s1941 = scalar_lea.vmem [#allocation8], %s1940
          %1942 = dma.done %s1938, 384
        $region64: #{tpu_custom_call.1} parent=59 // pred_fallthru
          _
        // Predicated region
        $region65: #{tpu_custom_call.1} parent=59 // pred_check
          %p1943 = pneg %p171
        $region66: #{tpu_custom_call.1} parent=59 // pred_check_branch
          %1945 = sbr.rel (%p1943) target = $region68
        $region67: #{tpu_custom_call.1} parent=59 // pred_region
          %s1946 = sand.u32 %s156, 1
          %s1947 = scalar_lea.sflag [#allocation10], %s1946
          %s1948 = sand.u32 %s156, 1
          %s1949 = smul.addr %s1948, 24
          %s1950 = scalar_lea.vmem [#allocation9], %s1949
          %1951 = dma.done %s1947, 384
        $region68: #{tpu_custom_call.1} parent=59 // pred_fallthru
          _
      $region60: #{tpu_custom_call.1} parent=5 // pred_fallthru
        _
    $region6: #{tpu_custom_call.1} parent=1 // loop_footer
      %s26 = sadd.s32 1, %s22
    $region7: #{tpu_custom_call.1} parent=1 // loop_footer_branch
      %21 = sbr.rel target = $region3
    $region8: #{tpu_custom_call.1} parent=1 // loop_exit
      _
    %1952 = vsyncpa [#allocation3], 1
    %s1953 = scalar_lea.sflag [#allocation3], 1
    %1954 = vsyncpa %s1953, 1
    %1955 = vsyncpa [#allocation6], 1
    %1956 = vsyncpa [#allocation4], 1
    %s1957 = scalar_lea.sflag [#allocation4], 1
    %1958 = vsyncpa %s1957, 1
    %1959 = vsyncpa [#allocation10], 1
    %s1960 = scalar_lea.sflag [#allocation10], 1
    %1961 = vsyncpa %s1960, 1

</llo_original>
